<compile_context>
chip_gen: v5e
topology: v5e:2x2
jax: 0.10.0
libtpu: 0.0.40
codegen_flags: <defaults>
</compile_context>

<pallas_src>
import jax
import jax.numpy as jnp
from jax.experimental import pallas as pl
from jax.experimental.pallas import tpu as pltpu


def _round_up(x, m):
    return (x + m - 1) // m * m


def _ppt_head_kernel(x_ref, w_ref, b_ref, ce_ref, o_ref):
    # proj_head: Linear(C_in -> D).  x arrives as f32 straight from HBM (no
    # XLA pre-pass); cast to bf16 on the VPU (free under the DMA/MXU) for the
    # native single-pass MXU matmul.  f32 accumulation.
    x = x_ref[...].astype(jnp.bfloat16)
    feat = jnp.dot(x, w_ref[...], preferred_element_type=jnp.float32)
    feat = feat + b_ref[...]
    # PyTorch F.normalize(p=2, eps=1e-12):
    #   x / max(||x||, eps) == x * rsqrt(max(sum(x^2), eps^2))
    # -> single EUP rsqrt + VPU multiply (do NOT "fix" back to sqrt+divide).
    # Kept in f32: v5e has no bf16 VPU/EUP path and these slots are idle.
    ss = jnp.sum(feat * feat, axis=-1, keepdims=True)
    feat = feat * jax.lax.rsqrt(jnp.maximum(ss, 1e-24))
    # Similarity vs. the condition-selected class embeddings.  They arrive
    # pre-gathered, pre-scaled by exp(logit_scale), pre-transposed and
    # zero-padded to K_pad=128 in glue (scale*(f @ ce.T) == f @ (scale*ce).T),
    # so this is one bf16 matmul with a lane-dense, unmasked output store.
    sim = jnp.dot(feat.astype(ce_ref.dtype), ce_ref[...],
                  preferred_element_type=jnp.float32)
    # bf16 store halves the largest HBM stream; accumulation stayed f32.
    o_ref[...] = sim.astype(o_ref.dtype)


def ppt_head(feat, w_proj, b_proj, class_emb_sel, logit_scale, *,
             tile_n=2048, num_cores=2, out_dtype=jnp.bfloat16):
    """PPT-v1m3 head.

    feat:          [N, C_in] backbone point features (f32 or bf16), unpadded.
    w_proj:        [C_in, D] proj_head weight.
    b_proj:        [1, D]    proj_head bias.
    class_emb_sel: [K, D]    class_embedding rows already selected by
                             valid_index[conditions.index(condition)].
    logit_scale:   [1]       raw (pre-exp) CLIP logit scale.

    Returns seg_logits of shape [N, K_pad] with K_pad = round_up(K, 128).
    Columns >= K are padding with value exactly 0 (NOT -inf); consumers must
    index [:, :K] (or mask) before any softmax/loss.
    """
    N, C_in = feat.shape
    D = w_proj.shape[1]
    K = class_emb_sel.shape[0]
    K_pad = _round_up(K, 128)      # lane-dense output stores

    # ---- tile choice: biggest power-of-two tile (<= cap) that still leaves
    # >= 2 pipelined grid steps per TensorCore (v7x has 2 TCs/chip; the rule
    # is a no-op on v5e/v6e where num_cores=2 is just a stricter target).
    tile_n = max(128, min(int(tile_n), 2048))
    while tile_n > 128 and pl.cdiv(N, tile_n) < 2 * num_cores:
        tile_n //= 2

    # ---- glue: one-time prep of the small resident operands only (no pass
    # over the dominant [N, C_in] stream).
    scale = jnp.exp(logit_scale[0]).astype(jnp.float32)
    w = w_proj.astype(jnp.bfloat16)                       # [C_in, D] resident
    b = b_proj.reshape(1, D).astype(jnp.float32)          # [1, D]    resident
    ce = (scale * class_emb_sel).T                        # [D, K]  f32
    ce = jnp.pad(ce, ((0, 0), (0, K_pad - K))).astype(jnp.bfloat16)

    out = pl.pallas_call(
        _ppt_head_kernel,
        out_shape=jax.ShapeDtypeStruct((N, K_pad), out_dtype),
        grid=(pl.cdiv(N, tile_n),),
        in_specs=[
            # point-feature tile; last dim = full array dim (96) is legal.
            # If profiling still shows exposed DMA, add
            # pipeline_mode=pl.Buffered(3) here.
            pl.BlockSpec((tile_n, C_in), lambda i: (i, 0)),
            pl.BlockSpec((C_in, D), lambda i: (0, 0)),     # proj weight
            pl.BlockSpec((1, D), lambda i: (0, 0)),        # proj bias
            pl.BlockSpec((D, K_pad), lambda i: (0, 0)),    # scaled class emb^T
        ],
        out_specs=pl.BlockSpec((tile_n, K_pad), lambda i: (i, 0)),
        compiler_params=pltpu.CompilerParams(
            dimension_semantics=("parallel",)),
    )(feat, w, b, ce)
    return out


if __name__ == "__main__":
    # Small but representative shapes.
    N = 2000              # number of points (deliberately not a tile multiple)
    C_in = 96             # backbone_out_channels (module default)
    D = 128               # CLIP text-projection dim (512 in ViT-B/16; shrunk)
    NUM_CLASS = 36        # len(class_name)

    conditions = ("Structured3D", "ScanNet", "S3DIS")
    valid_index = (
        (0, 1, 2, 3, 4, 5, 6, 7, 8, 11, 13, 14, 15, 16, 17, 18, 19, 20, 21,
         23, 25, 26, 33, 34, 35),
        (0, 1, 2, 3, 4, 5, 6, 7, 8, 9, 11, 12, 13, 15, 20, 22, 24, 25, 27, 34),
        (0, 1, 4, 5, 6, 7, 8, 10, 19, 29, 30, 31, 32),
    )
    condition = "ScanNet"

    key = jax.random.PRNGKey(0)
    k1, k2, k3, k4 = jax.random.split(key, 4)

    # Synthetic backbone output features (stand-in for SpUNet point.feat).
    feat = jax.random.normal(k1, (N, C_in), jnp.float32)

    # proj_head = nn.Linear(backbone_out_channels, clip_dim)
    w_proj = jax.random.normal(k2, (C_in, D), jnp.float32) * 0.02
    b_proj = jax.random.normal(k3, (1, D), jnp.float32) * 0.02

    # class_embedding buffer: CLIP text features, L2-normalized (as in __init__).
    class_embedding = jax.random.normal(k4, (NUM_CLASS, D), jnp.float32)
    class_embedding = class_embedding / jnp.linalg.norm(
        class_embedding, axis=-1, keepdims=True)

    # logit_scale buffer: CLIP init ln(1/0.07); exp() applied at use time.
    logit_scale = jnp.array([jnp.log(1.0 / 0.07)], jnp.float32)

    # Glue: gather the rows of class_embedding for the active condition.
    idx = jnp.array(valid_index[conditions.index(condition)], jnp.int32)
    class_emb_sel = class_embedding[idx, :]
    K = class_emb_sel.shape[0]
    K_pad = _round_up(K, 128)

    logits_padded = ppt_head(feat, w_proj, b_proj, class_emb_sel, logit_scale)
    logits_padded = jax.block_until_ready(logits_padded)
    assert logits_padded.shape == (N, K_pad)

    # Padded class columns are exactly 0 (not -inf) — must never see a softmax.
    assert bool(jnp.all(logits_padded[:, K:] == 0))

    # Demo-only slice for the reference check; production consumers should
    # index [:, :K] lazily / fuse into the follow-up loss kernel instead of
    # materializing a second copy of the output stream.
    seg_logits = jnp.asarray(logits_padded[:, :K], jnp.float32)

    # Full-f32 module semantics reference; tolerance sized for bf16 matmul
    # operands (two matmuls) + bf16 logit store, with |logit| <= ~6 here.
    scale = jnp.exp(logit_scale[0])
    r = feat @ w_proj + b_proj
    r = r / jnp.maximum(jnp.linalg.norm(r, axis=-1, keepdims=True), 1e-12)
    ref_f32 = scale * (r @ class_emb_sel.T)
    assert jnp.allclose(seg_logits, ref_f32, atol=2.5e-1, rtol=5e-2), (
        float(jnp.max(jnp.abs(seg_logits - ref_f32))))

    print("KERNEL_OK")
</pallas_src>

<mosaic_0001>
module attributes {stable_mosaic.version = 11 : i64} {
  func.func @_ppt_head_kernel(%arg0: i32, %arg1: memref<512x96xf32, #tpu.memory_space<vmem>>, %arg2: memref<96x128xbf16, #tpu.memory_space<vmem>>, %arg3: memref<1x128xf32, #tpu.memory_space<vmem>>, %arg4: memref<128x128xbf16, #tpu.memory_space<vmem>>, %arg5: memref<512x128xbf16, #tpu.memory_space<vmem>>) attributes {dimension_semantics = [#tpu.dimension_semantics<parallel>], iteration_bounds = array<i64: 4>, scalar_prefetch = 0 : i64, scratch_operands = 0 : i64, tpu.core_type = #tpu.core_type<tc>, window_params = [{transform_indices = @transform_0, window_bounds = array<i64: 512, 96>}, {pipeline_mode = #tpu.pipeline_mode<synchronous>, transform_indices = @transform_1, window_bounds = array<i64: 96, 128>}, {pipeline_mode = #tpu.pipeline_mode<synchronous>, transform_indices = @transform_2, window_bounds = array<i64: 1, 128>}, {pipeline_mode = #tpu.pipeline_mode<synchronous>, transform_indices = @transform_3, window_bounds = array<i64: 128, 128>}, {transform_indices = @transform_4, window_bounds = array<i64: 512, 128>}]} {
    %c0 = arith.constant 0 : index
    %c0_0 = arith.constant 0 : index
    %0 = vector.load %arg1[%c0, %c0_0] : memref<512x96xf32, #tpu.memory_space<vmem>>, vector<512x96xf32>
    %1 = arith.truncf %0 : vector<512x96xf32> to vector<512x96xbf16>
    %c0_1 = arith.constant 0 : index
    %c0_2 = arith.constant 0 : index
    %2 = vector.load %arg2[%c0_1, %c0_2] : memref<96x128xbf16, #tpu.memory_space<vmem>>, vector<96x128xbf16>
    %cst = arith.constant dense<0.000000e+00> : vector<512x128xf32>
    %3 = tpu.matmul %1, %2, %cst {dimension_numbers = #tpu.dot_dimension_numbers<[1], [0], [0], [1], [0, 0, 1, 1], [], []>} : vector<512x96xbf16>, vector<96x128xbf16>, vector<512x128xf32> -> vector<512x128xf32>
    %c0_3 = arith.constant 0 : index
    %c0_4 = arith.constant 0 : index
    %4 = vector.load %arg3[%c0_3, %c0_4] : memref<1x128xf32, #tpu.memory_space<vmem>>, vector<1x128xf32>
    %5 = vector.broadcast %4 : vector<1x128xf32> to vector<512x128xf32>
    %6 = arith.addf %3, %5 : vector<512x128xf32>
    %7 = arith.mulf %6, %6 : vector<512x128xf32>
    %cst_5 = arith.constant dense<0.000000e+00> : vector<512xf32>
    %8 = vector.multi_reduction <add>, %7, %cst_5 [1] : vector<512x128xf32> to vector<512xf32>
    %9 = vector.shape_cast %8 : vector<512xf32> to vector<512x1xf32>
    %cst_6 = arith.constant 1.000000e-24 : f32
    %10 = vector.broadcast %cst_6 : f32 to vector<512x1xf32>
    %11 = arith.maximumf %9, %10 : vector<512x1xf32>
    %12 = math.rsqrt %11 : vector<512x1xf32>
    %13 = vector.broadcast %12 : vector<512x1xf32> to vector<512x128xf32>
    %14 = arith.mulf %6, %13 : vector<512x128xf32>
    %15 = arith.truncf %14 : vector<512x128xf32> to vector<512x128xbf16>
    %c0_7 = arith.constant 0 : index
    %c0_8 = arith.constant 0 : index
    %16 = vector.load %arg4[%c0_7, %c0_8] : memref<128x128xbf16, #tpu.memory_space<vmem>>, vector<128x128xbf16>
    %cst_9 = arith.constant dense<0.000000e+00> : vector<512x128xf32>
    %17 = tpu.matmul %15, %16, %cst_9 {dimension_numbers = #tpu.dot_dimension_numbers<[1], [0], [0], [1], [0, 0, 1, 1], [], []>} : vector<512x128xbf16>, vector<128x128xbf16>, vector<512x128xf32> -> vector<512x128xf32>
    %18 = arith.truncf %17 : vector<512x128xf32> to vector<512x128xbf16>
    %c0_10 = arith.constant 0 : index
    %c0_11 = arith.constant 0 : index
    %19 = vector.load %arg5[%c0_10, %c0_11] : memref<512x128xbf16, #tpu.memory_space<vmem>>, vector<512x128xbf16>
    tpu.vector_store %arg5[%c0_10, %c0_11], %18 {strides = array<i32>} : memref<512x128xbf16, #tpu.memory_space<vmem>>, vector<512x128xbf16>,
    return
  }
  func.func @transform_0(%arg0: i32) -> (i32, i32) {
    %c0_i32 = arith.constant 0 : i32
    %c0_i32_0 = arith.constant 0 : i32
    return %arg0, %c0_i32 : i32, i32
  }
  func.func @transform_1(%arg0: i32) -> (i32, i32) {
    %c0_i32 = arith.constant 0 : i32
    %c0_i32_0 = arith.constant 0 : i32
    %c0_i32_1 = arith.constant 0 : i32
    return %c0_i32, %c0_i32_0 : i32, i32
  }
  func.func @transform_2(%arg0: i32) -> (i32, i32) {
    %c0_i32 = arith.constant 0 : i32
    %c0_i32_0 = arith.constant 0 : i32
    %c0_i32_1 = arith.constant 0 : i32
    return %c0_i32, %c0_i32_0 : i32, i32
  }
  func.func @transform_3(%arg0: i32) -> (i32, i32) {
    %c0_i32 = arith.constant 0 : i32
    %c0_i32_0 = arith.constant 0 : i32
    %c0_i32_1 = arith.constant 0 : i32
    return %c0_i32, %c0_i32_0 : i32, i32
  }
  func.func @transform_4(%arg0: i32) -> (i32, i32) {
    %c0_i32 = arith.constant 0 : i32
    %c0_i32_0 = arith.constant 0 : i32
    return %arg0, %c0_i32 : i32, i32
  }
}

</mosaic_0001>

<llo_original>
// kernel: tpu_custom_call.1
$region0: #{tpu_custom_call.1}
  #allocation0 [shape = 'u32[]', space=smem, size = 0x4, offset = 0x4, fixed_abs, tag = 'smem constant byte address 0x4 - core index']
  #allocation1 [shape = 'u32[72,128]{1,0:T(1,128)}', space=vmem, size = 0x9000, scoped, tag = 'internal scratch']
  %s0 = inlined_call_operand.vmem [shape: f32[2000,96], index: 0, kind: input, shape index: {}]
  %s1 = inlined_call_operand.vmem [shape: bf16[96,128], index: 1, kind: input, shape index: {}]
  %s2 = inlined_call_operand.vmem [shape: f32[1,128], index: 2, kind: input, shape index: {}]
  %s3 = inlined_call_operand.vmem [shape: bf16[128,128], index: 3, kind: input, shape index: {}]
  %s4 = inlined_call_operand.hbm [shape: bf16[2000,128], index: 4, kind: output, shape index: {}]
  %s5 = sld [smem:[#allocation0]]
  $region49: #{tpu_custom_call.1} parent=0
    _
  %s7 = ssub.s32 1, %s5
  %s8 = scalar_select 0, %s7, %s5
  $region1: #{tpu_custom_call.1} parent=0
    #allocation2 [shape = 'u8[262144]{0}', space=vmem, size = 0x40000, scoped, tag = 'output window, operand 0']
    #allocation3 [shape = 's32[2]{0}', space=sflag, size = 0x8, scoped, tag = 'scoped memory for tpu_custom_call.1']
    %9 = vsyncpa [#allocation3], 0
    %s10 = scalar_lea.sflag [#allocation3], 1
    %11 = vsyncpa %s10, 0
    loop: start=0, step=1, limit=6
    $region2: #{tpu_custom_call.1} parent=1 // loop_pre_header
      _
    $region3: #{tpu_custom_call.1} parent=1 // loop_header
      %s13 = sphi 0, %s17
      %p14 = scmp.ge.s32.totalorder %s13, 6
      %s23 = sphi 0, %s25
      %s26 = sphi 0, %s23
      %s27 = sphi 0, %s26
      %s43 = sphi 0, %s27
      %s47 = sphi 0, %s47
      %s49 = sphi 0, %s47
      %s50 = sphi 0, %s49
      %s64 = sphi 0, %s50
      %s68 = sphi 0, %s68
      %s70 = sphi 0, %s68
      %s71 = sphi 0, %s70
      %s85 = sphi 0, %s71
      %s89 = sphi 0, %s89
      %s91 = sphi 0, %s89
      %s92 = sphi 0, %s91
      %s106 = sphi 0, %s92
      %s112 = sphi 0, %s114
      %s115 = sphi 0, %s112
      %s116 = sphi 0, %s115
      %s132 = sphi 0, %s116
    $region4: #{tpu_custom_call.1} parent=1 // loop_header_branch
      %16 = sbr.rel (%p14) target = $region8
    $region5: #{tpu_custom_call.1} parent=1 // loop_body
      %s18 = ssub.s32 %s13, 1
      %s19 = ssub.s32 %s13, 2
      %s20 = sadd.s32 %s13, 1
      %s21 = ssub.s32 %s13, %s20
      %p22 = scmp.eq.s32.totalorder %s21, 0
      %s24 = sadd.s32 %s23, 1
      %s25 = scalar_select %p22, %s23, %s24
      %p28 = pneg %p22
      %p29 = scmp.eq.s32.totalorder %s13, 3
      %p30 = por %p28, %p29
      %p31 = scmp.ne.s32.totalorder %s23, %s26
      %p32 = scmp.eq.s32.totalorder %s13, 0
      %p33 = por %p31, %p32
      %p34 = scmp.ne.s32.totalorder %s23, %s26
      %p35 = scmp.eq.s32.totalorder %s18, 3
      %p36 = por %p34, %p35
      %p37 = scmp.ne.s32.totalorder %s26, %s27
      %p38 = scmp.eq.s32.totalorder %s18, 0
      %p39 = por %p37, %p38
      %p40 = scmp.ne.s32.totalorder %s26, %s27
      %p41 = scmp.eq.s32.totalorder %s19, 3
      %p42 = por %p40, %p41
      %p44 = scmp.ne.s32.totalorder %s27, %s43
      %p45 = scmp.eq.s32.totalorder %s19, 0
      %p46 = por %p44, %p45
      %s48 = sadd.s32 %s47, 1
      %p51 = scmp.eq.s32.totalorder %s13, 3
      %p52 = scmp.ne.s32.totalorder %s47, %s49
      %p53 = scmp.eq.s32.totalorder %s13, 0
      %p54 = por %p52, %p53
      %p55 = scmp.ne.s32.totalorder %s47, %s49
      %p56 = scmp.eq.s32.totalorder %s18, 3
      %p57 = por %p55, %p56
      %p58 = scmp.ne.s32.totalorder %s49, %s50
      %p59 = scmp.eq.s32.totalorder %s18, 0
      %p60 = por %p58, %p59
      %p61 = scmp.ne.s32.totalorder %s49, %s50
      %p62 = scmp.eq.s32.totalorder %s19, 3
      %p63 = por %p61, %p62
      %p65 = scmp.ne.s32.totalorder %s50, %s64
      %p66 = scmp.eq.s32.totalorder %s19, 0
      %p67 = por %p65, %p66
      %s69 = sadd.s32 %s68, 1
      %p72 = scmp.eq.s32.totalorder %s13, 3
      %p73 = scmp.ne.s32.totalorder %s68, %s70
      %p74 = scmp.eq.s32.totalorder %s13, 0
      %p75 = por %p73, %p74
      %p76 = scmp.ne.s32.totalorder %s68, %s70
      %p77 = scmp.eq.s32.totalorder %s18, 3
      %p78 = por %p76, %p77
      %p79 = scmp.ne.s32.totalorder %s70, %s71
      %p80 = scmp.eq.s32.totalorder %s18, 0
      %p81 = por %p79, %p80
      %p82 = scmp.ne.s32.totalorder %s70, %s71
      %p83 = scmp.eq.s32.totalorder %s19, 3
      %p84 = por %p82, %p83
      %p86 = scmp.ne.s32.totalorder %s71, %s85
      %p87 = scmp.eq.s32.totalorder %s19, 0
      %p88 = por %p86, %p87
      %s90 = sadd.s32 %s89, 1
      %p93 = scmp.eq.s32.totalorder %s13, 3
      %p94 = scmp.ne.s32.totalorder %s89, %s91
      %p95 = scmp.eq.s32.totalorder %s13, 0
      %p96 = por %p94, %p95
      %p97 = scmp.ne.s32.totalorder %s89, %s91
      %p98 = scmp.eq.s32.totalorder %s18, 3
      %p99 = por %p97, %p98
      %p100 = scmp.ne.s32.totalorder %s91, %s92
      %p101 = scmp.eq.s32.totalorder %s18, 0
      %p102 = por %p100, %p101
      %p103 = scmp.ne.s32.totalorder %s91, %s92
      %p104 = scmp.eq.s32.totalorder %s19, 3
      %p105 = por %p103, %p104
      %p107 = scmp.ne.s32.totalorder %s92, %s106
      %p108 = scmp.eq.s32.totalorder %s19, 0
      %p109 = por %p107, %p108
      %s110 = ssub.s32 %s13, %s20
      %p111 = scmp.eq.s32.totalorder %s110, 0
      %s113 = sadd.s32 %s112, 1
      %s114 = scalar_select %p111, %s112, %s113
      %p117 = pneg %p111
      %p118 = scmp.eq.s32.totalorder %s13, 3
      %p119 = por %p117, %p118
      %p120 = scmp.ne.s32.totalorder %s112, %s115
      %p121 = scmp.eq.s32.totalorder %s13, 0
      %p122 = por %p120, %p121
      %p123 = scmp.ne.s32.totalorder %s112, %s115
      %p124 = scmp.eq.s32.totalorder %s18, 3
      %p125 = por %p123, %p124
      %p126 = scmp.ne.s32.totalorder %s115, %s116
      %p127 = scmp.eq.s32.totalorder %s18, 0
      %p128 = por %p126, %p127
      %p129 = scmp.ne.s32.totalorder %s115, %s116
      %p130 = scmp.eq.s32.totalorder %s19, 3
      %p131 = por %p129, %p130
      %p133 = scmp.ne.s32.totalorder %s116, %s132
      %p134 = scmp.eq.s32.totalorder %s19, 0
      %p135 = por %p133, %p134
      %p136 = scmp.le.s32.totalorder 1, %s13
      %p137 = scmp.lt.s32.totalorder %s13, 5
      %p138 = pnand %p136, %p137
      %p139 = pneg %p138
      // Predicated region
      $region9: #{tpu_custom_call.1} parent=5 // pred_check
        _
      $region10: #{tpu_custom_call.1} parent=5 // pred_check_branch
        %141 = sbr.rel (%p138) target = $region12
      $region11: #{tpu_custom_call.1} parent=5 // pred_region
        %s142 = ssub.s32 %s13, 1
        // Predicated region
        $region13: #{tpu_custom_call.1} parent=11 // pred_check
          %p143 = pneg %p60
        $region14: #{tpu_custom_call.1} parent=11 // pred_check_branch
          %145 = sbr.rel (%p143) target = $region16
        $region15: #{tpu_custom_call.1} parent=11 // pred_region
          _
        $region16: #{tpu_custom_call.1} parent=11 // pred_fallthru
          _
        // Predicated region
        $region17: #{tpu_custom_call.1} parent=11 // pred_check
          %p146 = pneg %p81
        $region18: #{tpu_custom_call.1} parent=11 // pred_check_branch
          %148 = sbr.rel (%p146) target = $region20
        $region19: #{tpu_custom_call.1} parent=11 // pred_region
          _
        $region20: #{tpu_custom_call.1} parent=11 // pred_fallthru
          _
        // Predicated region
        $region21: #{tpu_custom_call.1} parent=11 // pred_check
          %p149 = pneg %p102
        $region22: #{tpu_custom_call.1} parent=11 // pred_check_branch
          %151 = sbr.rel (%p149) target = $region24
        $region23: #{tpu_custom_call.1} parent=11 // pred_region
          _
        $region24: #{tpu_custom_call.1} parent=11 // pred_fallthru
          _
      $region12: #{tpu_custom_call.1} parent=5 // pred_fallthru
        _
      %p152 = scmp.lt.s32.totalorder %s13, 4
      // Predicated region
      $region25: #{tpu_custom_call.1} parent=5 // pred_check
        %p153 = pneg %p152
      $region26: #{tpu_custom_call.1} parent=5 // pred_check_branch
        %155 = sbr.rel (%p153) target = $region28
      $region27: #{tpu_custom_call.1} parent=5 // pred_region
        // Predicated region
        $region29: #{tpu_custom_call.1} parent=27 // pred_check
          %p156 = pneg %p33
        $region30: #{tpu_custom_call.1} parent=27 // pred_check_branch
          %158 = sbr.rel (%p156) target = $region32
        $region31: #{tpu_custom_call.1} parent=27 // pred_region
          %s159 = smul.u32 64, %s13
          %s160 = ssub.s32 250, %s159
          %p161 = scmp.lt.s32.totalorder %s160, 64
          %s162 = scalar_select %p161, %s160, 64
          %s163 = smul.u32 8, %s162
          %p164 = scmp.lt.s32.totalorder %s159, 249
          %s165 = scalar_select %p164, %s159, 249
          %s166 = smul.addr %s165, 8
          %s167 = scalar_lea.vmem %s0, %s166
          %s168 = smul.u32 64, %s13
          %s169 = ssub.s32 250, %s168
          %p170 = scmp.lt.s32.totalorder %s169, 64
          %s171 = scalar_select %p170, %s169, 64
          %s172 = smul.u32 8, %s171
        $region32: #{tpu_custom_call.1} parent=27 // pred_fallthru
          _
      $region28: #{tpu_custom_call.1} parent=5 // pred_fallthru
        _
      %p173 = scmp.le.s32.totalorder 1, %s13
      %p174 = scmp.lt.s32.totalorder %s13, 5
      %p175 = pnand %p173, %p174
      %p176 = pneg %p175
      // Predicated region
      $region33: #{tpu_custom_call.1} parent=5 // pred_check
        _
      $region34: #{tpu_custom_call.1} parent=5 // pred_check_branch
        %178 = sbr.rel (%p175) target = $region36
      $region35: #{tpu_custom_call.1} parent=5 // pred_region
        %s179 = ssub.s32 %s13, 1
        %s180 = smul.u32 64, %s18
        %s181 = ssub.s32 250, %s180
        %p182 = scmp.lt.s32.totalorder %s181, 64
        %s183 = scalar_select %p182, %s181, 64
        %s184 = smul.u32 8, %s183
        %p185 = scmp.lt.s32.totalorder %s180, 249
        %s186 = scalar_select %p185, %s180, 249
        %s187 = smul.addr %s186, 8
        %s188 = scalar_lea.vmem %s0, %s187
        %p189 = pneg %p39
        %p190 = pneg %p36
        %p191 = pneg %p60
        %p192 = pneg %p57
        %p193 = pneg %p81
        %p194 = pneg %p78
        %p195 = pneg %p102
        %p196 = pneg %p99
        %p197 = pneg %p128
        %p198 = pneg %p125
        %s199 = sand.u32 %s115, 1
        %s200 = scalar_lea.sflag [#allocation3], %s199
        %s201 = sand.u32 %s115, 1
        %s202 = smul.addr %s201, 256
        %s203 = scalar_lea.vmem [#allocation2], %s202
        %s204 = smul.u32 64, %s18
        %s205 = ssub.s32 250, %s204
        %p206 = scmp.lt.s32.totalorder %s205, 64
        %s207 = scalar_select %p206, %s205, 64
        %s208 = smul.u32 8, %s207
        %p209 = scmp.lt.s32.totalorder %s204, 249
        %s210 = scalar_select %p209, %s204, 249
        %s211 = smul.addr %s210, 8
        %s212 = scalar_lea.vmem %s0, %s211
        %s213 = smul.u32 64, %s18
        %s214 = ssub.s32 250, %s213
        %p215 = scmp.lt.s32.totalorder %s214, 64
        %s216 = scalar_select %p215, %s214, 64
        %s217 = smul.u32 8, %s216
        %s218 = smul.u32 64, %s18
        %s219 = ssub.s32 250, %s218
        %p220 = scmp.lt.s32.totalorder %s219, 64
        %s221 = scalar_select %p220, %s219, 64
        %s222 = smul.u32 4, %s221
        %v224 = vld [vmem:[%s212] sm:$0xff]
        %v225 = vld [vmem:[%s212 + $0x8] sm:$0xff]
        %v226 = vld [vmem:[%s212 + $0x10] sm:$0xff]
        %v227 = vld [vmem:[%s212 + $0x18] sm:$0xff]
        %v228 = vld [vmem:[%s212 + $0x20] sm:$0xff]
        %v229 = vld [vmem:[%s212 + $0x28] sm:$0xff]
        %v230 = vld [vmem:[%s212 + $0x30] sm:$0xff]
        %v231 = vld [vmem:[%s212 + $0x38] sm:$0xff]
        %v232 = vld [vmem:[%s212 + $0x40] sm:$0xff]
        %v233 = vld [vmem:[%s212 + $0x48] sm:$0xff]
        %v234 = vld [vmem:[%s212 + $0x50] sm:$0xff]
        %v235 = vld [vmem:[%s212 + $0x58] sm:$0xff]
        %v236 = vld [vmem:[%s212 + $0x60] sm:$0xff]
        %v237 = vld [vmem:[%s212 + $0x68] sm:$0xff]
        %v238 = vld [vmem:[%s212 + $0x70] sm:$0xff]
        %v239 = vld [vmem:[%s212 + $0x78] sm:$0xff]
        %v240 = vld [vmem:[%s212 + $0x80] sm:$0xff]
        %v241 = vld [vmem:[%s212 + $0x88] sm:$0xff]
        %v242 = vld [vmem:[%s212 + $0x90] sm:$0xff]
        %v243 = vld [vmem:[%s212 + $0x98] sm:$0xff]
        %v244 = vld [vmem:[%s212 + $0xa0] sm:$0xff]
        %v245 = vld [vmem:[%s212 + $0xa8] sm:$0xff]
        %v246 = vld [vmem:[%s212 + $0xb0] sm:$0xff]
        %v247 = vld [vmem:[%s212 + $0xb8] sm:$0xff]
        %v248 = vld [vmem:[%s212 + $0xc0] sm:$0xff]
        %v249 = vld [vmem:[%s212 + $0xc8] sm:$0xff]
        %v250 = vld [vmem:[%s212 + $0xd0] sm:$0xff]
        %v251 = vld [vmem:[%s212 + $0xd8] sm:$0xff]
        %v252 = vld [vmem:[%s212 + $0xe0] sm:$0xff]
        %v253 = vld [vmem:[%s212 + $0xe8] sm:$0xff]
        %v254 = vld [vmem:[%s212 + $0xf0] sm:$0xff]
        %v255 = vld [vmem:[%s212 + $0xf8] sm:$0xff]
        %v256 = vld [vmem:[%s212 + $0x100] sm:$0xff]
        %v257 = vld [vmem:[%s212 + $0x108] sm:$0xff]
        %v258 = vld [vmem:[%s212 + $0x110] sm:$0xff]
        %v259 = vld [vmem:[%s212 + $0x118] sm:$0xff]
        %v260 = vld [vmem:[%s212 + $0x120] sm:$0xff]
        %v261 = vld [vmem:[%s212 + $0x128] sm:$0xff]
        %v262 = vld [vmem:[%s212 + $0x130] sm:$0xff]
        %v263 = vld [vmem:[%s212 + $0x138] sm:$0xff]
        %v264 = vld [vmem:[%s212 + $0x140] sm:$0xff]
        %v265 = vld [vmem:[%s212 + $0x148] sm:$0xff]
        %v266 = vld [vmem:[%s212 + $0x150] sm:$0xff]
        %v267 = vld [vmem:[%s212 + $0x158] sm:$0xff]
        %v268 = vld [vmem:[%s212 + $0x160] sm:$0xff]
        %v269 = vld [vmem:[%s212 + $0x168] sm:$0xff]
        %v270 = vld [vmem:[%s212 + $0x170] sm:$0xff]
        %v271 = vld [vmem:[%s212 + $0x178] sm:$0xff]
        %v272 = vld [vmem:[%s212 + $0x180] sm:$0xff]
        %v273 = vld [vmem:[%s212 + $0x188] sm:$0xff]
        %v274 = vld [vmem:[%s212 + $0x190] sm:$0xff]
        %v275 = vld [vmem:[%s212 + $0x198] sm:$0xff]
        %v276 = vld [vmem:[%s212 + $0x1a0] sm:$0xff]
        %v277 = vld [vmem:[%s212 + $0x1a8] sm:$0xff]
        %v278 = vld [vmem:[%s212 + $0x1b0] sm:$0xff]
        %v279 = vld [vmem:[%s212 + $0x1b8] sm:$0xff]
        %v280 = vld [vmem:[%s212 + $0x1c0] sm:$0xff]
        %v281 = vld [vmem:[%s212 + $0x1c8] sm:$0xff]
        %v282 = vld [vmem:[%s212 + $0x1d0] sm:$0xff]
        %v283 = vld [vmem:[%s212 + $0x1d8] sm:$0xff]
        %v284 = vld [vmem:[%s212 + $0x1e0] sm:$0xff]
        %v285 = vld [vmem:[%s212 + $0x1e8] sm:$0xff]
        %v286 = vld [vmem:[%s212 + $0x1f0] sm:$0xff]
        %v287 = vld [vmem:[%s212 + $0x1f8] sm:$0xff]
        %v288 = vpack.c.bf16 %v225, %v224
        %v289 = vpack.c.bf16 %v227, %v226
        %v290 = vpack.c.bf16 %v229, %v228
        %v291 = vpack.c.bf16 %v231, %v230
        %v292 = vpack.c.bf16 %v233, %v232
        %v293 = vpack.c.bf16 %v235, %v234
        %v294 = vpack.c.bf16 %v237, %v236
        %v295 = vpack.c.bf16 %v239, %v238
        %v296 = vpack.c.bf16 %v241, %v240
        %v297 = vpack.c.bf16 %v243, %v242
        %v298 = vpack.c.bf16 %v245, %v244
        %v299 = vpack.c.bf16 %v247, %v246
        %v300 = vpack.c.bf16 %v249, %v248
        %v301 = vpack.c.bf16 %v251, %v250
        %v302 = vpack.c.bf16 %v253, %v252
        %v303 = vpack.c.bf16 %v255, %v254
        %v304 = vpack.c.bf16 %v257, %v256
        %v305 = vpack.c.bf16 %v259, %v258
        %v306 = vpack.c.bf16 %v261, %v260
        %v307 = vpack.c.bf16 %v263, %v262
        %v308 = vpack.c.bf16 %v265, %v264
        %v309 = vpack.c.bf16 %v267, %v266
        %v310 = vpack.c.bf16 %v269, %v268
        %v311 = vpack.c.bf16 %v271, %v270
        %v312 = vpack.c.bf16 %v273, %v272
        %v313 = vpack.c.bf16 %v275, %v274
        %v314 = vpack.c.bf16 %v277, %v276
        %v315 = vpack.c.bf16 %v279, %v278
        %v316 = vpack.c.bf16 %v281, %v280
        %v317 = vpack.c.bf16 %v283, %v282
        %v318 = vpack.c.bf16 %v285, %v284
        %v319 = vpack.c.bf16 %v287, %v286
        %v320 = vld [vmem:[%s1] sm:$0xf]
        %v321 = vld [vmem:[%s1 + $0x4] sm:$0xf]
        %v322 = vld [vmem:[%s1 + $0x8] sm:$0xf]
        %v323 = vld [vmem:[%s1 + $0xc] sm:$0xf]
        %v324 = vld [vmem:[%s1 + $0x10] sm:$0xf]
        %v325 = vld [vmem:[%s1 + $0x14] sm:$0xf]
        %v326 = vld [vmem:[%s1 + $0x18] sm:$0xf]
        %v327 = vld [vmem:[%s1 + $0x1c] sm:$0xf]
        %v328 = vld [vmem:[%s1 + $0x20] sm:$0xf]
        %v329 = vld [vmem:[%s1 + $0x24] sm:$0xf]
        %v330 = vld [vmem:[%s1 + $0x28] sm:$0xf]
        %v331 = vld [vmem:[%s1 + $0x2c] sm:$0xf]
        %v332 = vld [vmem:[%s2] sm:$0x1]
        %v334 = vperm.slane %v332, 0
        %v348 = vunpack.c.l.b16 %v320
        %v349 = vunpack.c.l.b16 %v321
        %v350 = vunpack.c.l.b16 %v322
        %v351 = vunpack.c.l.b16 %v323
        %v352 = vunpack.c.l.b16 %v324
        %v353 = vunpack.c.l.b16 %v325
        %v354 = vunpack.c.l.b16 %v326
        %v355 = vunpack.c.l.b16 %v327
        %v356 = vunpack.c.l.b16 %v328
        %v357 = vunpack.c.l.b16 %v329
        %v358 = vunpack.c.l.b16 %v330
        %v359 = vunpack.c.l.b16 %v331
        %v360 = vpack.c.b16 %v349, %v348
        %v361 = vpack.c.b16 %v351, %v350
        %v362 = vpack.c.b16 %v353, %v352
        %v363 = vpack.c.b16 %v355, %v354
        %v364 = vpack.c.b16 %v357, %v356
        %v365 = vpack.c.b16 %v359, %v358
        %vm372 = vcmask 785408
        %v374 = vsel %vm372, %v288, 0
        %v377 = vsel %vm372, %v289, 0
        %v380 = vsel %vm372, %v290, 0
        %v383 = vsel %vm372, %v291, 0
        %v386 = vsel %vm372, %v292, 0
        %v389 = vsel %vm372, %v293, 0
        %v392 = vsel %vm372, %v294, 0
        %v395 = vsel %vm372, %v295, 0
        %v398 = vsel %vm372, %v296, 0
        %v401 = vsel %vm372, %v297, 0
        %v404 = vsel %vm372, %v298, 0
        %v407 = vsel %vm372, %v299, 0
        %v410 = vsel %vm372, %v300, 0
        %v413 = vsel %vm372, %v301, 0
        %v416 = vsel %vm372, %v302, 0
        %v419 = vsel %vm372, %v303, 0
        %v422 = vsel %vm372, %v304, 0
        %v425 = vsel %vm372, %v305, 0
        %v428 = vsel %vm372, %v306, 0
        %v431 = vsel %vm372, %v307, 0
        %v434 = vsel %vm372, %v308, 0
        %v437 = vsel %vm372, %v309, 0
        %v440 = vsel %vm372, %v310, 0
        %v443 = vsel %vm372, %v311, 0
        %v446 = vsel %vm372, %v312, 0
        %v449 = vsel %vm372, %v313, 0
        %v452 = vsel %vm372, %v314, 0
        %v455 = vsel %vm372, %v315, 0
        %v458 = vsel %vm372, %v316, 0
        %v461 = vsel %vm372, %v317, 0
        %v464 = vsel %vm372, %v318, 0
        %v467 = vsel %vm372, %v319, 0
        %469 = vmatpush.bf16.msra.mxu0 0
        %470 = vmatpush.bf16.msra.mxu0 0
        %471 = vmatpush.bf16.msra.mxu0 %v365
        %472 = vmatpush.bf16.msra.mxu0 %v364
        %473 = vmatpush.bf16.msra.mxu0 %v363
        %474 = vmatpush.bf16.msra.mxu0 %v362
        %475 = vmatpush.bf16.msra.mxu0 %v361
        %476 = vmatpush.bf16.msra.mxu0 %v360
        %477 = vmatmul.bf16.gmra.mxu0 %v374
        %v478 = vpop.f32.mrf.mxu0
        %v479 = vadd.f32 %v334, %v478
        %v480 = vpop.f32.mrf.mxu0
        %v481 = vadd.f32 %v334, %v480
        %482 = vmatmul.bf16.gmra.mxu0 %v377
        %v483 = vpop.f32.mrf.mxu0
        %v484 = vadd.f32 %v334, %v483
        %v485 = vpop.f32.mrf.mxu0
        %v486 = vadd.f32 %v334, %v485
        %487 = vmatmul.bf16.gmra.mxu0 %v380
        %v488 = vpop.f32.mrf.mxu0
        %v489 = vadd.f32 %v334, %v488
        %v490 = vpop.f32.mrf.mxu0
        %v491 = vadd.f32 %v334, %v490
        %492 = vmatmul.bf16.gmra.mxu0 %v383
        %v493 = vpop.f32.mrf.mxu0
        %v494 = vadd.f32 %v334, %v493
        %v495 = vpop.f32.mrf.mxu0
        %v496 = vadd.f32 %v334, %v495
        %497 = vmatmul.bf16.gmra.mxu0 %v386
        %v498 = vpop.f32.mrf.mxu0
        %v499 = vadd.f32 %v334, %v498
        %v500 = vpop.f32.mrf.mxu0
        %v501 = vadd.f32 %v334, %v500
        %502 = vmatmul.bf16.gmra.mxu0 %v389
        %v503 = vpop.f32.mrf.mxu0
        %v504 = vadd.f32 %v334, %v503
        %v505 = vpop.f32.mrf.mxu0
        %v506 = vadd.f32 %v334, %v505
        %507 = vmatmul.bf16.gmra.mxu0 %v392
        %v508 = vpop.f32.mrf.mxu0
        %v509 = vadd.f32 %v334, %v508
        %v510 = vpop.f32.mrf.mxu0
        %v511 = vadd.f32 %v334, %v510
        %512 = vmatmul.bf16.gmra.mxu0 %v395
        %v513 = vpop.f32.mrf.mxu0
        %v514 = vadd.f32 %v334, %v513
        %v515 = vpop.f32.mrf.mxu0
        %v516 = vadd.f32 %v334, %v515
        %517 = vmatmul.bf16.gmra.mxu0 %v398
        %v518 = vpop.f32.mrf.mxu0
        %v519 = vadd.f32 %v334, %v518
        %v520 = vpop.f32.mrf.mxu0
        %v521 = vadd.f32 %v334, %v520
        %522 = vmatmul.bf16.gmra.mxu0 %v401
        %v523 = vpop.f32.mrf.mxu0
        %v524 = vadd.f32 %v334, %v523
        %v525 = vpop.f32.mrf.mxu0
        %v526 = vadd.f32 %v334, %v525
        %527 = vmatmul.bf16.gmra.mxu0 %v404
        %v528 = vpop.f32.mrf.mxu0
        %v529 = vadd.f32 %v334, %v528
        %v530 = vpop.f32.mrf.mxu0
        %v531 = vadd.f32 %v334, %v530
        %532 = vmatmul.bf16.gmra.mxu0 %v407
        %v533 = vpop.f32.mrf.mxu0
        %v534 = vadd.f32 %v334, %v533
        %v535 = vpop.f32.mrf.mxu0
        %v536 = vadd.f32 %v334, %v535
        %537 = vmatmul.bf16.gmra.mxu0 %v410
        %v538 = vpop.f32.mrf.mxu0
        %v539 = vadd.f32 %v334, %v538
        %v540 = vpop.f32.mrf.mxu0
        %v541 = vadd.f32 %v334, %v540
        %542 = vmatmul.bf16.gmra.mxu0 %v413
        %v543 = vpop.f32.mrf.mxu0
        %v544 = vadd.f32 %v334, %v543
        %v545 = vpop.f32.mrf.mxu0
        %v546 = vadd.f32 %v334, %v545
        %547 = vmatmul.bf16.gmra.mxu0 %v416
        %v548 = vpop.f32.mrf.mxu0
        %v549 = vadd.f32 %v334, %v548
        %v550 = vpop.f32.mrf.mxu0
        %v551 = vadd.f32 %v334, %v550
        %552 = vmatmul.bf16.gmra.mxu0 %v419
        %v553 = vpop.f32.mrf.mxu0
        %v554 = vadd.f32 %v334, %v553
        %v555 = vpop.f32.mrf.mxu0
        %v556 = vadd.f32 %v334, %v555
        %557 = vmatmul.bf16.gmra.mxu0 %v422
        %v558 = vpop.f32.mrf.mxu0
        %v559 = vadd.f32 %v334, %v558
        %v560 = vpop.f32.mrf.mxu0
        %v561 = vadd.f32 %v334, %v560
        %562 = vmatmul.bf16.gmra.mxu0 %v425
        %v563 = vpop.f32.mrf.mxu0
        %v564 = vadd.f32 %v334, %v563
        %v565 = vpop.f32.mrf.mxu0
        %v566 = vadd.f32 %v334, %v565
        %567 = vmatmul.bf16.gmra.mxu0 %v428
        %v568 = vpop.f32.mrf.mxu0
        %v569 = vadd.f32 %v334, %v568
        %v570 = vpop.f32.mrf.mxu0
        %v571 = vadd.f32 %v334, %v570
        %572 = vmatmul.bf16.gmra.mxu0 %v431
        %v573 = vpop.f32.mrf.mxu0
        %v574 = vadd.f32 %v334, %v573
        %v575 = vpop.f32.mrf.mxu0
        %v576 = vadd.f32 %v334, %v575
        %577 = vmatmul.bf16.gmra.mxu0 %v434
        %v578 = vpop.f32.mrf.mxu0
        %v579 = vadd.f32 %v334, %v578
        %v580 = vpop.f32.mrf.mxu0
        %v581 = vadd.f32 %v334, %v580
        %582 = vmatmul.bf16.gmra.mxu0 %v437
        %v583 = vpop.f32.mrf.mxu0
        %v584 = vadd.f32 %v334, %v583
        %v585 = vpop.f32.mrf.mxu0
        %v586 = vadd.f32 %v334, %v585
        %587 = vmatmul.bf16.gmra.mxu0 %v440
        %v588 = vpop.f32.mrf.mxu0
        %v589 = vadd.f32 %v334, %v588
        %v590 = vpop.f32.mrf.mxu0
        %v591 = vadd.f32 %v334, %v590
        %592 = vmatmul.bf16.gmra.mxu0 %v443
        %v593 = vpop.f32.mrf.mxu0
        %v594 = vadd.f32 %v334, %v593
        %v595 = vpop.f32.mrf.mxu0
        %v596 = vadd.f32 %v334, %v595
        %597 = vmatmul.bf16.gmra.mxu0 %v446
        %v598 = vpop.f32.mrf.mxu0
        %v599 = vadd.f32 %v334, %v598
        %v600 = vpop.f32.mrf.mxu0
        %v601 = vadd.f32 %v334, %v600
        %602 = vmatmul.bf16.gmra.mxu0 %v449
        %v603 = vpop.f32.mrf.mxu0
        %v604 = vadd.f32 %v334, %v603
        %v605 = vpop.f32.mrf.mxu0
        %v606 = vadd.f32 %v334, %v605
        %607 = vmatmul.bf16.gmra.mxu0 %v452
        %v608 = vpop.f32.mrf.mxu0
        %v609 = vadd.f32 %v334, %v608
        %v610 = vpop.f32.mrf.mxu0
        %v611 = vadd.f32 %v334, %v610
        %612 = vmatmul.bf16.gmra.mxu0 %v455
        %v613 = vpop.f32.mrf.mxu0
        %v614 = vadd.f32 %v334, %v613
        %v615 = vpop.f32.mrf.mxu0
        %v616 = vadd.f32 %v334, %v615
        %617 = vmatmul.bf16.gmra.mxu0 %v458
        %v618 = vpop.f32.mrf.mxu0
        %v619 = vadd.f32 %v334, %v618
        %v620 = vpop.f32.mrf.mxu0
        %v621 = vadd.f32 %v334, %v620
        %622 = vmatmul.bf16.gmra.mxu0 %v461
        %v623 = vpop.f32.mrf.mxu0
        %v624 = vadd.f32 %v334, %v623
        %v625 = vpop.f32.mrf.mxu0
        %v626 = vadd.f32 %v334, %v625
        %627 = vmatmul.bf16.gmra.mxu0 %v464
        %v628 = vpop.f32.mrf.mxu0
        %v629 = vadd.f32 %v334, %v628
        %v630 = vpop.f32.mrf.mxu0
        %v631 = vadd.f32 %v334, %v630
        %632 = vmatmul.bf16.gmra.mxu0 %v467
        %v633 = vpop.f32.mrf.mxu0
        %v634 = vadd.f32 %v334, %v633
        %v635 = vpop.f32.mrf.mxu0
        %v636 = vadd.f32 %v334, %v635
        %637 = vdwg.mxu0
        %v638 = vmul.f32 %v479, %v479
        %v639 = vmul.f32 %v481, %v481
        %v640 = vmul.f32 %v484, %v484
        %v641 = vmul.f32 %v486, %v486
        %v642 = vmul.f32 %v489, %v489
        %v643 = vmul.f32 %v491, %v491
        %v644 = vmul.f32 %v494, %v494
        %v645 = vmul.f32 %v496, %v496
        %v646 = vmul.f32 %v499, %v499
        %v647 = vmul.f32 %v501, %v501
        %v648 = vmul.f32 %v504, %v504
        %v649 = vmul.f32 %v506, %v506
        %v650 = vmul.f32 %v509, %v509
        %v651 = vmul.f32 %v511, %v511
        %v652 = vmul.f32 %v514, %v514
        %v653 = vmul.f32 %v516, %v516
        %v654 = vmul.f32 %v519, %v519
        %v655 = vmul.f32 %v521, %v521
        %v656 = vmul.f32 %v524, %v524
        %v657 = vmul.f32 %v526, %v526
        %v658 = vmul.f32 %v529, %v529
        %v659 = vmul.f32 %v531, %v531
        %v660 = vmul.f32 %v534, %v534
        %v661 = vmul.f32 %v536, %v536
        %v662 = vmul.f32 %v539, %v539
        %v663 = vmul.f32 %v541, %v541
        %v664 = vmul.f32 %v544, %v544
        %v665 = vmul.f32 %v546, %v546
        %v666 = vmul.f32 %v549, %v549
        %v667 = vmul.f32 %v551, %v551
        %v668 = vmul.f32 %v554, %v554
        %v669 = vmul.f32 %v556, %v556
        %v670 = vmul.f32 %v559, %v559
        %v671 = vmul.f32 %v561, %v561
        %v672 = vmul.f32 %v564, %v564
        %v673 = vmul.f32 %v566, %v566
        %v674 = vmul.f32 %v569, %v569
        %v675 = vmul.f32 %v571, %v571
        %v676 = vmul.f32 %v574, %v574
        %v677 = vmul.f32 %v576, %v576
        %v678 = vmul.f32 %v579, %v579
        %v679 = vmul.f32 %v581, %v581
        %v680 = vmul.f32 %v584, %v584
        %v681 = vmul.f32 %v586, %v586
        %v682 = vmul.f32 %v589, %v589
        %v683 = vmul.f32 %v591, %v591
        %v684 = vmul.f32 %v594, %v594
        %v685 = vmul.f32 %v596, %v596
        %v686 = vmul.f32 %v599, %v599
        %v687 = vmul.f32 %v601, %v601
        %v688 = vmul.f32 %v604, %v604
        %v689 = vmul.f32 %v606, %v606
        %v690 = vmul.f32 %v609, %v609
        %v691 = vmul.f32 %v611, %v611
        %v692 = vmul.f32 %v614, %v614
        %v693 = vmul.f32 %v616, %v616
        %v694 = vmul.f32 %v619, %v619
        %v695 = vmul.f32 %v621, %v621
        %v696 = vmul.f32 %v624, %v624
        %v697 = vmul.f32 %v626, %v626
        %v698 = vmul.f32 %v629, %v629
        %v699 = vmul.f32 %v631, %v631
        %v700 = vmul.f32 %v634, %v634
        %v701 = vmul.f32 %v636, %v636
        %702 = vadd.xlane.f32.xlu0 %v638
        %v703 = vpop.xlane.xlu0 %702
        %704 = vadd.xlane.f32.xlu0 %v639
        %v705 = vpop.xlane.xlu0 %704
        %706 = vadd.xlane.f32.xlu0 %v640
        %v707 = vpop.xlane.xlu0 %706
        %708 = vadd.xlane.f32.xlu0 %v641
        %v709 = vpop.xlane.xlu0 %708
        %710 = vadd.xlane.f32.xlu0 %v642
        %v711 = vpop.xlane.xlu0 %710
        %712 = vadd.xlane.f32.xlu0 %v643
        %v713 = vpop.xlane.xlu0 %712
        %714 = vadd.xlane.f32.xlu0 %v644
        %v715 = vpop.xlane.xlu0 %714
        %716 = vadd.xlane.f32.xlu0 %v645
        %v717 = vpop.xlane.xlu0 %716
        %718 = vadd.xlane.f32.xlu0 %v646
        %v719 = vpop.xlane.xlu0 %718
        %720 = vadd.xlane.f32.xlu0 %v647
        %v721 = vpop.xlane.xlu0 %720
        %722 = vadd.xlane.f32.xlu0 %v648
        %v723 = vpop.xlane.xlu0 %722
        %724 = vadd.xlane.f32.xlu0 %v649
        %v725 = vpop.xlane.xlu0 %724
        %726 = vadd.xlane.f32.xlu0 %v650
        %v727 = vpop.xlane.xlu0 %726
        %728 = vadd.xlane.f32.xlu0 %v651
        %v729 = vpop.xlane.xlu0 %728
        %730 = vadd.xlane.f32.xlu0 %v652
        %v731 = vpop.xlane.xlu0 %730
        %732 = vadd.xlane.f32.xlu0 %v653
        %v733 = vpop.xlane.xlu0 %732
        %734 = vadd.xlane.f32.xlu0 %v654
        %v735 = vpop.xlane.xlu0 %734
        %736 = vadd.xlane.f32.xlu0 %v655
        %v737 = vpop.xlane.xlu0 %736
        %738 = vadd.xlane.f32.xlu0 %v656
        %v739 = vpop.xlane.xlu0 %738
        %740 = vadd.xlane.f32.xlu0 %v657
        %v741 = vpop.xlane.xlu0 %740
        %742 = vadd.xlane.f32.xlu0 %v658
        %v743 = vpop.xlane.xlu0 %742
        %744 = vadd.xlane.f32.xlu0 %v659
        %v745 = vpop.xlane.xlu0 %744
        %746 = vadd.xlane.f32.xlu0 %v660
        %v747 = vpop.xlane.xlu0 %746
        %748 = vadd.xlane.f32.xlu0 %v661
        %v749 = vpop.xlane.xlu0 %748
        %750 = vadd.xlane.f32.xlu0 %v662
        %v751 = vpop.xlane.xlu0 %750
        %752 = vadd.xlane.f32.xlu0 %v663
        %v753 = vpop.xlane.xlu0 %752
        %754 = vadd.xlane.f32.xlu0 %v664
        %v755 = vpop.xlane.xlu0 %754
        %756 = vadd.xlane.f32.xlu0 %v665
        %v757 = vpop.xlane.xlu0 %756
        %758 = vadd.xlane.f32.xlu0 %v666
        %v759 = vpop.xlane.xlu0 %758
        %760 = vadd.xlane.f32.xlu0 %v667
        %v761 = vpop.xlane.xlu0 %760
        %762 = vadd.xlane.f32.xlu0 %v668
        %v763 = vpop.xlane.xlu0 %762
        %764 = vadd.xlane.f32.xlu0 %v669
        %v765 = vpop.xlane.xlu0 %764
        %766 = vadd.xlane.f32.xlu0 %v670
        %v767 = vpop.xlane.xlu0 %766
        %768 = vadd.xlane.f32.xlu0 %v671
        %v769 = vpop.xlane.xlu0 %768
        %770 = vadd.xlane.f32.xlu0 %v672
        %v771 = vpop.xlane.xlu0 %770
        %772 = vadd.xlane.f32.xlu0 %v673
        %v773 = vpop.xlane.xlu0 %772
        %774 = vadd.xlane.f32.xlu0 %v674
        %v775 = vpop.xlane.xlu0 %774
        %776 = vadd.xlane.f32.xlu0 %v675
        %v777 = vpop.xlane.xlu0 %776
        %778 = vadd.xlane.f32.xlu0 %v676
        %v779 = vpop.xlane.xlu0 %778
        %780 = vadd.xlane.f32.xlu0 %v677
        %v781 = vpop.xlane.xlu0 %780
        %782 = vadd.xlane.f32.xlu0 %v678
        %v783 = vpop.xlane.xlu0 %782
        %784 = vadd.xlane.f32.xlu0 %v679
        %v785 = vpop.xlane.xlu0 %784
        %786 = vadd.xlane.f32.xlu0 %v680
        %v787 = vpop.xlane.xlu0 %786
        %788 = vadd.xlane.f32.xlu0 %v681
        %v789 = vpop.xlane.xlu0 %788
        %790 = vadd.xlane.f32.xlu0 %v682
        %v791 = vpop.xlane.xlu0 %790
        %792 = vadd.xlane.f32.xlu0 %v683
        %v793 = vpop.xlane.xlu0 %792
        %794 = vadd.xlane.f32.xlu0 %v684
        %v795 = vpop.xlane.xlu0 %794
        %796 = vadd.xlane.f32.xlu0 %v685
        %v797 = vpop.xlane.xlu0 %796
        %798 = vadd.xlane.f32.xlu0 %v686
        %v799 = vpop.xlane.xlu0 %798
        %800 = vadd.xlane.f32.xlu0 %v687
        %v801 = vpop.xlane.xlu0 %800
        %802 = vadd.xlane.f32.xlu0 %v688
        %v803 = vpop.xlane.xlu0 %802
        %804 = vadd.xlane.f32.xlu0 %v689
        %v805 = vpop.xlane.xlu0 %804
        %806 = vadd.xlane.f32.xlu0 %v690
        %v807 = vpop.xlane.xlu0 %806
        %808 = vadd.xlane.f32.xlu0 %v691
        %v809 = vpop.xlane.xlu0 %808
        %810 = vadd.xlane.f32.xlu0 %v692
        %v811 = vpop.xlane.xlu0 %810
        %812 = vadd.xlane.f32.xlu0 %v693
        %v813 = vpop.xlane.xlu0 %812
        %814 = vadd.xlane.f32.xlu0 %v694
        %v815 = vpop.xlane.xlu0 %814
        %816 = vadd.xlane.f32.xlu0 %v695
        %v817 = vpop.xlane.xlu0 %816
        %818 = vadd.xlane.f32.xlu0 %v696
        %v819 = vpop.xlane.xlu0 %818
        %820 = vadd.xlane.f32.xlu0 %v697
        %v821 = vpop.xlane.xlu0 %820
        %822 = vadd.xlane.f32.xlu0 %v698
        %v823 = vpop.xlane.xlu0 %822
        %824 = vadd.xlane.f32.xlu0 %v699
        %v825 = vpop.xlane.xlu0 %824
        %826 = vadd.xlane.f32.xlu0 %v700
        %v827 = vpop.xlane.xlu0 %826
        %828 = vadd.xlane.f32.xlu0 %v701
        %v829 = vpop.xlane.xlu0 %828
        %v830 = vmax.f32 %v703, 1e-24
        %v831 = vmax.f32 %v705, 1e-24
        %v832 = vmax.f32 %v707, 1e-24
        %v833 = vmax.f32 %v709, 1e-24
        %v834 = vmax.f32 %v711, 1e-24
        %v835 = vmax.f32 %v713, 1e-24
        %v836 = vmax.f32 %v715, 1e-24
        %v837 = vmax.f32 %v717, 1e-24
        %v838 = vmax.f32 %v719, 1e-24
        %v839 = vmax.f32 %v721, 1e-24
        %v840 = vmax.f32 %v723, 1e-24
        %v841 = vmax.f32 %v725, 1e-24
        %v842 = vmax.f32 %v727, 1e-24
        %v843 = vmax.f32 %v729, 1e-24
        %v844 = vmax.f32 %v731, 1e-24
        %v845 = vmax.f32 %v733, 1e-24
        %v846 = vmax.f32 %v735, 1e-24
        %v847 = vmax.f32 %v737, 1e-24
        %v848 = vmax.f32 %v739, 1e-24
        %v849 = vmax.f32 %v741, 1e-24
        %v850 = vmax.f32 %v743, 1e-24
        %v851 = vmax.f32 %v745, 1e-24
        %v852 = vmax.f32 %v747, 1e-24
        %v853 = vmax.f32 %v749, 1e-24
        %v854 = vmax.f32 %v751, 1e-24
        %v855 = vmax.f32 %v753, 1e-24
        %v856 = vmax.f32 %v755, 1e-24
        %v857 = vmax.f32 %v757, 1e-24
        %v858 = vmax.f32 %v759, 1e-24
        %v859 = vmax.f32 %v761, 1e-24
        %v860 = vmax.f32 %v763, 1e-24
        %v861 = vmax.f32 %v765, 1e-24
        %v862 = vmax.f32 %v767, 1e-24
        %v863 = vmax.f32 %v769, 1e-24
        %v864 = vmax.f32 %v771, 1e-24
        %v865 = vmax.f32 %v773, 1e-24
        %v866 = vmax.f32 %v775, 1e-24
        %v867 = vmax.f32 %v777, 1e-24
        %v868 = vmax.f32 %v779, 1e-24
        %v869 = vmax.f32 %v781, 1e-24
        %v870 = vmax.f32 %v783, 1e-24
        %v871 = vmax.f32 %v785, 1e-24
        %v872 = vmax.f32 %v787, 1e-24
        %v873 = vmax.f32 %v789, 1e-24
        %v874 = vmax.f32 %v791, 1e-24
        %v875 = vmax.f32 %v793, 1e-24
        %v876 = vmax.f32 %v795, 1e-24
        %v877 = vmax.f32 %v797, 1e-24
        %v878 = vmax.f32 %v799, 1e-24
        %v879 = vmax.f32 %v801, 1e-24
        %v880 = vmax.f32 %v803, 1e-24
        %v881 = vmax.f32 %v805, 1e-24
        %v882 = vmax.f32 %v807, 1e-24
        %v883 = vmax.f32 %v809, 1e-24
        %v884 = vmax.f32 %v811, 1e-24
        %v885 = vmax.f32 %v813, 1e-24
        %v886 = vmax.f32 %v815, 1e-24
        %v887 = vmax.f32 %v817, 1e-24
        %v888 = vmax.f32 %v819, 1e-24
        %v889 = vmax.f32 %v821, 1e-24
        %v890 = vmax.f32 %v823, 1e-24
        %v891 = vmax.f32 %v825, 1e-24
        %v892 = vmax.f32 %v827, 1e-24
        %v893 = vmax.f32 %v829, 1e-24
        %v894 = vrsqrt.pop %v830
        %v895 = vmul.f32 %v894, %v830
        %v896 = vmul.f32 %v895, %v894
        %v897 = vmul.f32 0.5, %v896
        %v898 = vsub.f32 1.5, %v897
        %v899 = vmul.f32 %v894, %v898
        %vm900 = vweird.f32 %v830
        %vm901 = vweird.f32 %v894
        %vm902 = vmor %vm900, %vm901
        %v903 = vsel %vm902, %v894, %v899
        %v904 = vrsqrt.pop %v831
        %v905 = vmul.f32 %v904, %v831
        %v906 = vmul.f32 %v905, %v904
        %v907 = vmul.f32 0.5, %v906
        %v908 = vsub.f32 1.5, %v907
        %v909 = vmul.f32 %v904, %v908
        %vm910 = vweird.f32 %v831
        %vm911 = vweird.f32 %v904
        %vm912 = vmor %vm910, %vm911
        %v913 = vsel %vm912, %v904, %v909
        %v914 = vrsqrt.pop %v832
        %v915 = vmul.f32 %v914, %v832
        %v916 = vmul.f32 %v915, %v914
        %v917 = vmul.f32 0.5, %v916
        %v918 = vsub.f32 1.5, %v917
        %v919 = vmul.f32 %v914, %v918
        %vm920 = vweird.f32 %v832
        %vm921 = vweird.f32 %v914
        %vm922 = vmor %vm920, %vm921
        %v923 = vsel %vm922, %v914, %v919
        %v924 = vrsqrt.pop %v833
        %v925 = vmul.f32 %v924, %v833
        %v926 = vmul.f32 %v925, %v924
        %v927 = vmul.f32 0.5, %v926
        %v928 = vsub.f32 1.5, %v927
        %v929 = vmul.f32 %v924, %v928
        %vm930 = vweird.f32 %v833
        %vm931 = vweird.f32 %v924
        %vm932 = vmor %vm930, %vm931
        %v933 = vsel %vm932, %v924, %v929
        %v934 = vrsqrt.pop %v834
        %v935 = vmul.f32 %v934, %v834
        %v936 = vmul.f32 %v935, %v934
        %v937 = vmul.f32 0.5, %v936
        %v938 = vsub.f32 1.5, %v937
        %v939 = vmul.f32 %v934, %v938
        %vm940 = vweird.f32 %v834
        %vm941 = vweird.f32 %v934
        %vm942 = vmor %vm940, %vm941
        %v943 = vsel %vm942, %v934, %v939
        %v944 = vrsqrt.pop %v835
        %v945 = vmul.f32 %v944, %v835
        %v946 = vmul.f32 %v945, %v944
        %v947 = vmul.f32 0.5, %v946
        %v948 = vsub.f32 1.5, %v947
        %v949 = vmul.f32 %v944, %v948
        %vm950 = vweird.f32 %v835
        %vm951 = vweird.f32 %v944
        %vm952 = vmor %vm950, %vm951
        %v953 = vsel %vm952, %v944, %v949
        %v954 = vrsqrt.pop %v836
        %v955 = vmul.f32 %v954, %v836
        %v956 = vmul.f32 %v955, %v954
        %v957 = vmul.f32 0.5, %v956
        %v958 = vsub.f32 1.5, %v957
        %v959 = vmul.f32 %v954, %v958
        %vm960 = vweird.f32 %v836
        %vm961 = vweird.f32 %v954
        %vm962 = vmor %vm960, %vm961
        %v963 = vsel %vm962, %v954, %v959
        %v964 = vrsqrt.pop %v837
        %v965 = vmul.f32 %v964, %v837
        %v966 = vmul.f32 %v965, %v964
        %v967 = vmul.f32 0.5, %v966
        %v968 = vsub.f32 1.5, %v967
        %v969 = vmul.f32 %v964, %v968
        %vm970 = vweird.f32 %v837
        %vm971 = vweird.f32 %v964
        %vm972 = vmor %vm970, %vm971
        %v973 = vsel %vm972, %v964, %v969
        %v974 = vrsqrt.pop %v838
        %v975 = vmul.f32 %v974, %v838
        %v976 = vmul.f32 %v975, %v974
        %v977 = vmul.f32 0.5, %v976
        %v978 = vsub.f32 1.5, %v977
        %v979 = vmul.f32 %v974, %v978
        %vm980 = vweird.f32 %v838
        %vm981 = vweird.f32 %v974
        %vm982 = vmor %vm980, %vm981
        %v983 = vsel %vm982, %v974, %v979
        %v984 = vrsqrt.pop %v839
        %v985 = vmul.f32 %v984, %v839
        %v986 = vmul.f32 %v985, %v984
        %v987 = vmul.f32 0.5, %v986
        %v988 = vsub.f32 1.5, %v987
        %v989 = vmul.f32 %v984, %v988
        %vm990 = vweird.f32 %v839
        %vm991 = vweird.f32 %v984
        %vm992 = vmor %vm990, %vm991
        %v993 = vsel %vm992, %v984, %v989
        %v994 = vrsqrt.pop %v840
        %v995 = vmul.f32 %v994, %v840
        %v996 = vmul.f32 %v995, %v994
        %v997 = vmul.f32 0.5, %v996
        %v998 = vsub.f32 1.5, %v997
        %v999 = vmul.f32 %v994, %v998
        %vm1000 = vweird.f32 %v840
        %vm1001 = vweird.f32 %v994
        %vm1002 = vmor %vm1000, %vm1001
        %v1003 = vsel %vm1002, %v994, %v999
        %v1004 = vrsqrt.pop %v841
        %v1005 = vmul.f32 %v1004, %v841
        %v1006 = vmul.f32 %v1005, %v1004
        %v1007 = vmul.f32 0.5, %v1006
        %v1008 = vsub.f32 1.5, %v1007
        %v1009 = vmul.f32 %v1004, %v1008
        %vm1010 = vweird.f32 %v841
        %vm1011 = vweird.f32 %v1004
        %vm1012 = vmor %vm1010, %vm1011
        %v1013 = vsel %vm1012, %v1004, %v1009
        %v1014 = vrsqrt.pop %v842
        %v1015 = vmul.f32 %v1014, %v842
        %v1016 = vmul.f32 %v1015, %v1014
        %v1017 = vmul.f32 0.5, %v1016
        %v1018 = vsub.f32 1.5, %v1017
        %v1019 = vmul.f32 %v1014, %v1018
        %vm1020 = vweird.f32 %v842
        %vm1021 = vweird.f32 %v1014
        %vm1022 = vmor %vm1020, %vm1021
        %v1023 = vsel %vm1022, %v1014, %v1019
        %v1024 = vrsqrt.pop %v843
        %v1025 = vmul.f32 %v1024, %v843
        %v1026 = vmul.f32 %v1025, %v1024
        %v1027 = vmul.f32 0.5, %v1026
        %v1028 = vsub.f32 1.5, %v1027
        %v1029 = vmul.f32 %v1024, %v1028
        %vm1030 = vweird.f32 %v843
        %vm1031 = vweird.f32 %v1024
        %vm1032 = vmor %vm1030, %vm1031
        %v1033 = vsel %vm1032, %v1024, %v1029
        %v1034 = vrsqrt.pop %v844
        %v1035 = vmul.f32 %v1034, %v844
        %v1036 = vmul.f32 %v1035, %v1034
        %v1037 = vmul.f32 0.5, %v1036
        %v1038 = vsub.f32 1.5, %v1037
        %v1039 = vmul.f32 %v1034, %v1038
        %vm1040 = vweird.f32 %v844
        %vm1041 = vweird.f32 %v1034
        %vm1042 = vmor %vm1040, %vm1041
        %v1043 = vsel %vm1042, %v1034, %v1039
        %v1044 = vrsqrt.pop %v845
        %v1045 = vmul.f32 %v1044, %v845
        %v1046 = vmul.f32 %v1045, %v1044
        %v1047 = vmul.f32 0.5, %v1046
        %v1048 = vsub.f32 1.5, %v1047
        %v1049 = vmul.f32 %v1044, %v1048
        %vm1050 = vweird.f32 %v845
        %vm1051 = vweird.f32 %v1044
        %vm1052 = vmor %vm1050, %vm1051
        %v1053 = vsel %vm1052, %v1044, %v1049
        %v1054 = vrsqrt.pop %v846
        %v1055 = vmul.f32 %v1054, %v846
        %v1056 = vmul.f32 %v1055, %v1054
        %v1057 = vmul.f32 0.5, %v1056
        %v1058 = vsub.f32 1.5, %v1057
        %v1059 = vmul.f32 %v1054, %v1058
        %vm1060 = vweird.f32 %v846
        %vm1061 = vweird.f32 %v1054
        %vm1062 = vmor %vm1060, %vm1061
        %v1063 = vsel %vm1062, %v1054, %v1059
        %v1064 = vrsqrt.pop %v847
        %v1065 = vmul.f32 %v1064, %v847
        %v1066 = vmul.f32 %v1065, %v1064
        %v1067 = vmul.f32 0.5, %v1066
        %v1068 = vsub.f32 1.5, %v1067
        %v1069 = vmul.f32 %v1064, %v1068
        %vm1070 = vweird.f32 %v847
        %vm1071 = vweird.f32 %v1064
        %vm1072 = vmor %vm1070, %vm1071
        %v1073 = vsel %vm1072, %v1064, %v1069
        %v1074 = vrsqrt.pop %v848
        %v1075 = vmul.f32 %v1074, %v848
        %v1076 = vmul.f32 %v1075, %v1074
        %v1077 = vmul.f32 0.5, %v1076
        %v1078 = vsub.f32 1.5, %v1077
        %v1079 = vmul.f32 %v1074, %v1078
        %vm1080 = vweird.f32 %v848
        %vm1081 = vweird.f32 %v1074
        %vm1082 = vmor %vm1080, %vm1081
        %v1083 = vsel %vm1082, %v1074, %v1079
        %v1084 = vrsqrt.pop %v849
        %v1085 = vmul.f32 %v1084, %v849
        %v1086 = vmul.f32 %v1085, %v1084
        %v1087 = vmul.f32 0.5, %v1086
        %v1088 = vsub.f32 1.5, %v1087
        %v1089 = vmul.f32 %v1084, %v1088
        %vm1090 = vweird.f32 %v849
        %vm1091 = vweird.f32 %v1084
        %vm1092 = vmor %vm1090, %vm1091
        %v1093 = vsel %vm1092, %v1084, %v1089
        %v1094 = vrsqrt.pop %v850
        %v1095 = vmul.f32 %v1094, %v850
        %v1096 = vmul.f32 %v1095, %v1094
        %v1097 = vmul.f32 0.5, %v1096
        %v1098 = vsub.f32 1.5, %v1097
        %v1099 = vmul.f32 %v1094, %v1098
        %vm1100 = vweird.f32 %v850
        %vm1101 = vweird.f32 %v1094
        %vm1102 = vmor %vm1100, %vm1101
        %v1103 = vsel %vm1102, %v1094, %v1099
        %v1104 = vrsqrt.pop %v851
        %v1105 = vmul.f32 %v1104, %v851
        %v1106 = vmul.f32 %v1105, %v1104
        %v1107 = vmul.f32 0.5, %v1106
        %v1108 = vsub.f32 1.5, %v1107
        %v1109 = vmul.f32 %v1104, %v1108
        %vm1110 = vweird.f32 %v851
        %vm1111 = vweird.f32 %v1104
        %vm1112 = vmor %vm1110, %vm1111
        %v1113 = vsel %vm1112, %v1104, %v1109
        %v1114 = vrsqrt.pop %v852
        %v1115 = vmul.f32 %v1114, %v852
        %v1116 = vmul.f32 %v1115, %v1114
        %v1117 = vmul.f32 0.5, %v1116
        %v1118 = vsub.f32 1.5, %v1117
        %v1119 = vmul.f32 %v1114, %v1118
        %vm1120 = vweird.f32 %v852
        %vm1121 = vweird.f32 %v1114
        %vm1122 = vmor %vm1120, %vm1121
        %v1123 = vsel %vm1122, %v1114, %v1119
        %v1124 = vrsqrt.pop %v853
        %v1125 = vmul.f32 %v1124, %v853
        %v1126 = vmul.f32 %v1125, %v1124
        %v1127 = vmul.f32 0.5, %v1126
        %v1128 = vsub.f32 1.5, %v1127
        %v1129 = vmul.f32 %v1124, %v1128
        %vm1130 = vweird.f32 %v853
        %vm1131 = vweird.f32 %v1124
        %vm1132 = vmor %vm1130, %vm1131
        %v1133 = vsel %vm1132, %v1124, %v1129
        %v1134 = vrsqrt.pop %v854
        %v1135 = vmul.f32 %v1134, %v854
        %v1136 = vmul.f32 %v1135, %v1134
        %v1137 = vmul.f32 0.5, %v1136
        %v1138 = vsub.f32 1.5, %v1137
        %v1139 = vmul.f32 %v1134, %v1138
        %vm1140 = vweird.f32 %v854
        %vm1141 = vweird.f32 %v1134
        %vm1142 = vmor %vm1140, %vm1141
        %v1143 = vsel %vm1142, %v1134, %v1139
        %v1144 = vrsqrt.pop %v855
        %v1145 = vmul.f32 %v1144, %v855
        %v1146 = vmul.f32 %v1145, %v1144
        %v1147 = vmul.f32 0.5, %v1146
        %v1148 = vsub.f32 1.5, %v1147
        %v1149 = vmul.f32 %v1144, %v1148
        %vm1150 = vweird.f32 %v855
        %vm1151 = vweird.f32 %v1144
        %vm1152 = vmor %vm1150, %vm1151
        %v1153 = vsel %vm1152, %v1144, %v1149
        %v1154 = vrsqrt.pop %v856
        %v1155 = vmul.f32 %v1154, %v856
        %v1156 = vmul.f32 %v1155, %v1154
        %v1157 = vmul.f32 0.5, %v1156
        %v1158 = vsub.f32 1.5, %v1157
        %v1159 = vmul.f32 %v1154, %v1158
        %vm1160 = vweird.f32 %v856
        %vm1161 = vweird.f32 %v1154
        %vm1162 = vmor %vm1160, %vm1161
        %v1163 = vsel %vm1162, %v1154, %v1159
        %v1164 = vrsqrt.pop %v857
        %v1165 = vmul.f32 %v1164, %v857
        %v1166 = vmul.f32 %v1165, %v1164
        %v1167 = vmul.f32 0.5, %v1166
        %v1168 = vsub.f32 1.5, %v1167
        %v1169 = vmul.f32 %v1164, %v1168
        %vm1170 = vweird.f32 %v857
        %vm1171 = vweird.f32 %v1164
        %vm1172 = vmor %vm1170, %vm1171
        %v1173 = vsel %vm1172, %v1164, %v1169
        %v1174 = vrsqrt.pop %v858
        %v1175 = vmul.f32 %v1174, %v858
        %v1176 = vmul.f32 %v1175, %v1174
        %v1177 = vmul.f32 0.5, %v1176
        %v1178 = vsub.f32 1.5, %v1177
        %v1179 = vmul.f32 %v1174, %v1178
        %vm1180 = vweird.f32 %v858
        %vm1181 = vweird.f32 %v1174
        %vm1182 = vmor %vm1180, %vm1181
        %v1183 = vsel %vm1182, %v1174, %v1179
        %v1184 = vrsqrt.pop %v859
        %v1185 = vmul.f32 %v1184, %v859
        %v1186 = vmul.f32 %v1185, %v1184
        %v1187 = vmul.f32 0.5, %v1186
        %v1188 = vsub.f32 1.5, %v1187
        %v1189 = vmul.f32 %v1184, %v1188
        %vm1190 = vweird.f32 %v859
        %vm1191 = vweird.f32 %v1184
        %vm1192 = vmor %vm1190, %vm1191
        %v1193 = vsel %vm1192, %v1184, %v1189
        %v1194 = vrsqrt.pop %v860
        %v1195 = vmul.f32 %v1194, %v860
        %v1196 = vmul.f32 %v1195, %v1194
        %v1197 = vmul.f32 0.5, %v1196
        %v1198 = vsub.f32 1.5, %v1197
        %v1199 = vmul.f32 %v1194, %v1198
        %vm1200 = vweird.f32 %v860
        %vm1201 = vweird.f32 %v1194
        %vm1202 = vmor %vm1200, %vm1201
        %v1203 = vsel %vm1202, %v1194, %v1199
        %v1204 = vrsqrt.pop %v861
        %v1205 = vmul.f32 %v1204, %v861
        %v1206 = vmul.f32 %v1205, %v1204
        %v1207 = vmul.f32 0.5, %v1206
        %v1208 = vsub.f32 1.5, %v1207
        %v1209 = vmul.f32 %v1204, %v1208
        %vm1210 = vweird.f32 %v861
        %vm1211 = vweird.f32 %v1204
        %vm1212 = vmor %vm1210, %vm1211
        %v1213 = vsel %vm1212, %v1204, %v1209
        %v1214 = vrsqrt.pop %v862
        %v1215 = vmul.f32 %v1214, %v862
        %v1216 = vmul.f32 %v1215, %v1214
        %v1217 = vmul.f32 0.5, %v1216
        %v1218 = vsub.f32 1.5, %v1217
        %v1219 = vmul.f32 %v1214, %v1218
        %vm1220 = vweird.f32 %v862
        %vm1221 = vweird.f32 %v1214
        %vm1222 = vmor %vm1220, %vm1221
        %v1223 = vsel %vm1222, %v1214, %v1219
        %v1224 = vrsqrt.pop %v863
        %v1225 = vmul.f32 %v1224, %v863
        %v1226 = vmul.f32 %v1225, %v1224
        %v1227 = vmul.f32 0.5, %v1226
        %v1228 = vsub.f32 1.5, %v1227
        %v1229 = vmul.f32 %v1224, %v1228
        %vm1230 = vweird.f32 %v863
        %vm1231 = vweird.f32 %v1224
        %vm1232 = vmor %vm1230, %vm1231
        %v1233 = vsel %vm1232, %v1224, %v1229
        %v1234 = vrsqrt.pop %v864
        %v1235 = vmul.f32 %v1234, %v864
        %v1236 = vmul.f32 %v1235, %v1234
        %v1237 = vmul.f32 0.5, %v1236
        %v1238 = vsub.f32 1.5, %v1237
        %v1239 = vmul.f32 %v1234, %v1238
        %vm1240 = vweird.f32 %v864
        %vm1241 = vweird.f32 %v1234
        %vm1242 = vmor %vm1240, %vm1241
        %v1243 = vsel %vm1242, %v1234, %v1239
        %v1244 = vrsqrt.pop %v865
        %v1245 = vmul.f32 %v1244, %v865
        %v1246 = vmul.f32 %v1245, %v1244
        %v1247 = vmul.f32 0.5, %v1246
        %v1248 = vsub.f32 1.5, %v1247
        %v1249 = vmul.f32 %v1244, %v1248
        %vm1250 = vweird.f32 %v865
        %vm1251 = vweird.f32 %v1244
        %vm1252 = vmor %vm1250, %vm1251
        %v1253 = vsel %vm1252, %v1244, %v1249
        %v1254 = vrsqrt.pop %v866
        %v1255 = vmul.f32 %v1254, %v866
        %v1256 = vmul.f32 %v1255, %v1254
        %v1257 = vmul.f32 0.5, %v1256
        %v1258 = vsub.f32 1.5, %v1257
        %v1259 = vmul.f32 %v1254, %v1258
        %vm1260 = vweird.f32 %v866
        %vm1261 = vweird.f32 %v1254
        %vm1262 = vmor %vm1260, %vm1261
        %v1263 = vsel %vm1262, %v1254, %v1259
        %v1264 = vrsqrt.pop %v867
        %v1265 = vmul.f32 %v1264, %v867
        %v1266 = vmul.f32 %v1265, %v1264
        %v1267 = vmul.f32 0.5, %v1266
        %v1268 = vsub.f32 1.5, %v1267
        %v1269 = vmul.f32 %v1264, %v1268
        %vm1270 = vweird.f32 %v867
        %vm1271 = vweird.f32 %v1264
        %vm1272 = vmor %vm1270, %vm1271
        %v1273 = vsel %vm1272, %v1264, %v1269
        %v1274 = vrsqrt.pop %v868
        %v1275 = vmul.f32 %v1274, %v868
        %v1276 = vmul.f32 %v1275, %v1274
        %v1277 = vmul.f32 0.5, %v1276
        %v1278 = vsub.f32 1.5, %v1277
        %v1279 = vmul.f32 %v1274, %v1278
        %vm1280 = vweird.f32 %v868
        %vm1281 = vweird.f32 %v1274
        %vm1282 = vmor %vm1280, %vm1281
        %v1283 = vsel %vm1282, %v1274, %v1279
        %v1284 = vrsqrt.pop %v869
        %v1285 = vmul.f32 %v1284, %v869
        %v1286 = vmul.f32 %v1285, %v1284
        %v1287 = vmul.f32 0.5, %v1286
        %v1288 = vsub.f32 1.5, %v1287
        %v1289 = vmul.f32 %v1284, %v1288
        %vm1290 = vweird.f32 %v869
        %vm1291 = vweird.f32 %v1284
        %vm1292 = vmor %vm1290, %vm1291
        %v1293 = vsel %vm1292, %v1284, %v1289
        %v1294 = vrsqrt.pop %v870
        %v1295 = vmul.f32 %v1294, %v870
        %v1296 = vmul.f32 %v1295, %v1294
        %v1297 = vmul.f32 0.5, %v1296
        %v1298 = vsub.f32 1.5, %v1297
        %v1299 = vmul.f32 %v1294, %v1298
        %vm1300 = vweird.f32 %v870
        %vm1301 = vweird.f32 %v1294
        %vm1302 = vmor %vm1300, %vm1301
        %v1303 = vsel %vm1302, %v1294, %v1299
        %v1304 = vrsqrt.pop %v871
        %v1305 = vmul.f32 %v1304, %v871
        %v1306 = vmul.f32 %v1305, %v1304
        %v1307 = vmul.f32 0.5, %v1306
        %v1308 = vsub.f32 1.5, %v1307
        %v1309 = vmul.f32 %v1304, %v1308
        %vm1310 = vweird.f32 %v871
        %vm1311 = vweird.f32 %v1304
        %vm1312 = vmor %vm1310, %vm1311
        %v1313 = vsel %vm1312, %v1304, %v1309
        %v1314 = vrsqrt.pop %v872
        %v1315 = vmul.f32 %v1314, %v872
        %v1316 = vmul.f32 %v1315, %v1314
        %v1317 = vmul.f32 0.5, %v1316
        %v1318 = vsub.f32 1.5, %v1317
        %v1319 = vmul.f32 %v1314, %v1318
        %vm1320 = vweird.f32 %v872
        %vm1321 = vweird.f32 %v1314
        %vm1322 = vmor %vm1320, %vm1321
        %v1323 = vsel %vm1322, %v1314, %v1319
        %v1324 = vrsqrt.pop %v873
        %v1325 = vmul.f32 %v1324, %v873
        %v1326 = vmul.f32 %v1325, %v1324
        %v1327 = vmul.f32 0.5, %v1326
        %v1328 = vsub.f32 1.5, %v1327
        %v1329 = vmul.f32 %v1324, %v1328
        %vm1330 = vweird.f32 %v873
        %vm1331 = vweird.f32 %v1324
        %vm1332 = vmor %vm1330, %vm1331
        %v1333 = vsel %vm1332, %v1324, %v1329
        %v1334 = vrsqrt.pop %v874
        %v1335 = vmul.f32 %v1334, %v874
        %v1336 = vmul.f32 %v1335, %v1334
        %v1337 = vmul.f32 0.5, %v1336
        %v1338 = vsub.f32 1.5, %v1337
        %v1339 = vmul.f32 %v1334, %v1338
        %vm1340 = vweird.f32 %v874
        %vm1341 = vweird.f32 %v1334
        %vm1342 = vmor %vm1340, %vm1341
        %v1343 = vsel %vm1342, %v1334, %v1339
        %v1344 = vrsqrt.pop %v875
        %v1345 = vmul.f32 %v1344, %v875
        %v1346 = vmul.f32 %v1345, %v1344
        %v1347 = vmul.f32 0.5, %v1346
        %v1348 = vsub.f32 1.5, %v1347
        %v1349 = vmul.f32 %v1344, %v1348
        %vm1350 = vweird.f32 %v875
        %vm1351 = vweird.f32 %v1344
        %vm1352 = vmor %vm1350, %vm1351
        %v1353 = vsel %vm1352, %v1344, %v1349
        %v1354 = vrsqrt.pop %v876
        %v1355 = vmul.f32 %v1354, %v876
        %v1356 = vmul.f32 %v1355, %v1354
        %v1357 = vmul.f32 0.5, %v1356
        %v1358 = vsub.f32 1.5, %v1357
        %v1359 = vmul.f32 %v1354, %v1358
        %vm1360 = vweird.f32 %v876
        %vm1361 = vweird.f32 %v1354
        %vm1362 = vmor %vm1360, %vm1361
        %v1363 = vsel %vm1362, %v1354, %v1359
        %v1364 = vrsqrt.pop %v877
        %v1365 = vmul.f32 %v1364, %v877
        %v1366 = vmul.f32 %v1365, %v1364
        %v1367 = vmul.f32 0.5, %v1366
        %v1368 = vsub.f32 1.5, %v1367
        %v1369 = vmul.f32 %v1364, %v1368
        %vm1370 = vweird.f32 %v877
        %vm1371 = vweird.f32 %v1364
        %vm1372 = vmor %vm1370, %vm1371
        %v1373 = vsel %vm1372, %v1364, %v1369
        %v1374 = vrsqrt.pop %v878
        %v1375 = vmul.f32 %v1374, %v878
        %v1376 = vmul.f32 %v1375, %v1374
        %v1377 = vmul.f32 0.5, %v1376
        %v1378 = vsub.f32 1.5, %v1377
        %v1379 = vmul.f32 %v1374, %v1378
        %vm1380 = vweird.f32 %v878
        %vm1381 = vweird.f32 %v1374
        %vm1382 = vmor %vm1380, %vm1381
        %v1383 = vsel %vm1382, %v1374, %v1379
        %v1384 = vrsqrt.pop %v879
        %v1385 = vmul.f32 %v1384, %v879
        %v1386 = vmul.f32 %v1385, %v1384
        %v1387 = vmul.f32 0.5, %v1386
        %v1388 = vsub.f32 1.5, %v1387
        %v1389 = vmul.f32 %v1384, %v1388
        %vm1390 = vweird.f32 %v879
        %vm1391 = vweird.f32 %v1384
        %vm1392 = vmor %vm1390, %vm1391
        %v1393 = vsel %vm1392, %v1384, %v1389
        %v1394 = vrsqrt.pop %v880
        %v1395 = vmul.f32 %v1394, %v880
        %v1396 = vmul.f32 %v1395, %v1394
        %v1397 = vmul.f32 0.5, %v1396
        %v1398 = vsub.f32 1.5, %v1397
        %v1399 = vmul.f32 %v1394, %v1398
        %vm1400 = vweird.f32 %v880
        %vm1401 = vweird.f32 %v1394
        %vm1402 = vmor %vm1400, %vm1401
        %v1403 = vsel %vm1402, %v1394, %v1399
        %v1404 = vrsqrt.pop %v881
        %v1405 = vmul.f32 %v1404, %v881
        %v1406 = vmul.f32 %v1405, %v1404
        %v1407 = vmul.f32 0.5, %v1406
        %v1408 = vsub.f32 1.5, %v1407
        %v1409 = vmul.f32 %v1404, %v1408
        %vm1410 = vweird.f32 %v881
        %vm1411 = vweird.f32 %v1404
        %vm1412 = vmor %vm1410, %vm1411
        %v1413 = vsel %vm1412, %v1404, %v1409
        %v1414 = vrsqrt.pop %v882
        %v1415 = vmul.f32 %v1414, %v882
        %v1416 = vmul.f32 %v1415, %v1414
        %v1417 = vmul.f32 0.5, %v1416
        %v1418 = vsub.f32 1.5, %v1417
        %v1419 = vmul.f32 %v1414, %v1418
        %vm1420 = vweird.f32 %v882
        %vm1421 = vweird.f32 %v1414
        %vm1422 = vmor %vm1420, %vm1421
        %v1423 = vsel %vm1422, %v1414, %v1419
        %v1424 = vrsqrt.pop %v883
        %v1425 = vmul.f32 %v1424, %v883
        %v1426 = vmul.f32 %v1425, %v1424
        %v1427 = vmul.f32 0.5, %v1426
        %v1428 = vsub.f32 1.5, %v1427
        %v1429 = vmul.f32 %v1424, %v1428
        %vm1430 = vweird.f32 %v883
        %vm1431 = vweird.f32 %v1424
        %vm1432 = vmor %vm1430, %vm1431
        %v1433 = vsel %vm1432, %v1424, %v1429
        %v1434 = vrsqrt.pop %v884
        %v1435 = vmul.f32 %v1434, %v884
        %v1436 = vmul.f32 %v1435, %v1434
        %v1437 = vmul.f32 0.5, %v1436
        %v1438 = vsub.f32 1.5, %v1437
        %v1439 = vmul.f32 %v1434, %v1438
        %vm1440 = vweird.f32 %v884
        %vm1441 = vweird.f32 %v1434
        %vm1442 = vmor %vm1440, %vm1441
        %v1443 = vsel %vm1442, %v1434, %v1439
        %v1444 = vrsqrt.pop %v885
        %v1445 = vmul.f32 %v1444, %v885
        %v1446 = vmul.f32 %v1445, %v1444
        %v1447 = vmul.f32 0.5, %v1446
        %v1448 = vsub.f32 1.5, %v1447
        %v1449 = vmul.f32 %v1444, %v1448
        %vm1450 = vweird.f32 %v885
        %vm1451 = vweird.f32 %v1444
        %vm1452 = vmor %vm1450, %vm1451
        %v1453 = vsel %vm1452, %v1444, %v1449
        %v1454 = vrsqrt.pop %v886
        %v1455 = vmul.f32 %v1454, %v886
        %v1456 = vmul.f32 %v1455, %v1454
        %v1457 = vmul.f32 0.5, %v1456
        %v1458 = vsub.f32 1.5, %v1457
        %v1459 = vmul.f32 %v1454, %v1458
        %vm1460 = vweird.f32 %v886
        %vm1461 = vweird.f32 %v1454
        %vm1462 = vmor %vm1460, %vm1461
        %v1463 = vsel %vm1462, %v1454, %v1459
        %v1464 = vrsqrt.pop %v887
        %v1465 = vmul.f32 %v1464, %v887
        %v1466 = vmul.f32 %v1465, %v1464
        %v1467 = vmul.f32 0.5, %v1466
        %v1468 = vsub.f32 1.5, %v1467
        %v1469 = vmul.f32 %v1464, %v1468
        %vm1470 = vweird.f32 %v887
        %vm1471 = vweird.f32 %v1464
        %vm1472 = vmor %vm1470, %vm1471
        %v1473 = vsel %vm1472, %v1464, %v1469
        %v1474 = vrsqrt.pop %v888
        %v1475 = vmul.f32 %v1474, %v888
        %v1476 = vmul.f32 %v1475, %v1474
        %v1477 = vmul.f32 0.5, %v1476
        %v1478 = vsub.f32 1.5, %v1477
        %v1479 = vmul.f32 %v1474, %v1478
        %vm1480 = vweird.f32 %v888
        %vm1481 = vweird.f32 %v1474
        %vm1482 = vmor %vm1480, %vm1481
        %v1483 = vsel %vm1482, %v1474, %v1479
        %v1484 = vrsqrt.pop %v889
        %v1485 = vmul.f32 %v1484, %v889
        %v1486 = vmul.f32 %v1485, %v1484
        %v1487 = vmul.f32 0.5, %v1486
        %v1488 = vsub.f32 1.5, %v1487
        %v1489 = vmul.f32 %v1484, %v1488
        %vm1490 = vweird.f32 %v889
        %vm1491 = vweird.f32 %v1484
        %vm1492 = vmor %vm1490, %vm1491
        %v1493 = vsel %vm1492, %v1484, %v1489
        %v1494 = vrsqrt.pop %v890
        %v1495 = vmul.f32 %v1494, %v890
        %v1496 = vmul.f32 %v1495, %v1494
        %v1497 = vmul.f32 0.5, %v1496
        %v1498 = vsub.f32 1.5, %v1497
        %v1499 = vmul.f32 %v1494, %v1498
        %vm1500 = vweird.f32 %v890
        %vm1501 = vweird.f32 %v1494
        %vm1502 = vmor %vm1500, %vm1501
        %v1503 = vsel %vm1502, %v1494, %v1499
        %v1504 = vrsqrt.pop %v891
        %v1505 = vmul.f32 %v1504, %v891
        %v1506 = vmul.f32 %v1505, %v1504
        %v1507 = vmul.f32 0.5, %v1506
        %v1508 = vsub.f32 1.5, %v1507
        %v1509 = vmul.f32 %v1504, %v1508
        %vm1510 = vweird.f32 %v891
        %vm1511 = vweird.f32 %v1504
        %vm1512 = vmor %vm1510, %vm1511
        %v1513 = vsel %vm1512, %v1504, %v1509
        %v1514 = vrsqrt.pop %v892
        %v1515 = vmul.f32 %v1514, %v892
        %v1516 = vmul.f32 %v1515, %v1514
        %v1517 = vmul.f32 0.5, %v1516
        %v1518 = vsub.f32 1.5, %v1517
        %v1519 = vmul.f32 %v1514, %v1518
        %vm1520 = vweird.f32 %v892
        %vm1521 = vweird.f32 %v1514
        %vm1522 = vmor %vm1520, %vm1521
        %v1523 = vsel %vm1522, %v1514, %v1519
        %v1524 = vrsqrt.pop %v893
        %v1525 = vmul.f32 %v1524, %v893
        %v1526 = vmul.f32 %v1525, %v1524
        %v1527 = vmul.f32 0.5, %v1526
        %v1528 = vsub.f32 1.5, %v1527
        %v1529 = vmul.f32 %v1524, %v1528
        %vm1530 = vweird.f32 %v893
        %vm1531 = vweird.f32 %v1524
        %vm1532 = vmor %vm1530, %vm1531
        %v1533 = vsel %vm1532, %v1524, %v1529
        %v1534 = vmul.f32 %v479, %v903
        %v1535 = vmul.f32 %v481, %v913
        %v1536 = vmul.f32 %v484, %v923
        %v1537 = vmul.f32 %v486, %v933
        %v1538 = vmul.f32 %v489, %v943
        %v1539 = vmul.f32 %v491, %v953
        %v1540 = vmul.f32 %v494, %v963
        %v1541 = vmul.f32 %v496, %v973
        %v1542 = vmul.f32 %v499, %v983
        %v1543 = vmul.f32 %v501, %v993
        %v1544 = vmul.f32 %v504, %v1003
        %v1545 = vmul.f32 %v506, %v1013
        %v1546 = vmul.f32 %v509, %v1023
        %v1547 = vmul.f32 %v511, %v1033
        %v1548 = vmul.f32 %v514, %v1043
        %v1549 = vmul.f32 %v516, %v1053
        %v1550 = vmul.f32 %v519, %v1063
        %v1551 = vmul.f32 %v521, %v1073
        %v1552 = vmul.f32 %v524, %v1083
        %v1553 = vmul.f32 %v526, %v1093
        %v1554 = vmul.f32 %v529, %v1103
        %v1555 = vmul.f32 %v531, %v1113
        %v1556 = vmul.f32 %v534, %v1123
        %v1557 = vmul.f32 %v536, %v1133
        %v1558 = vmul.f32 %v539, %v1143
        %v1559 = vmul.f32 %v541, %v1153
        %v1560 = vmul.f32 %v544, %v1163
        %v1561 = vmul.f32 %v546, %v1173
        %v1562 = vmul.f32 %v549, %v1183
        %v1563 = vmul.f32 %v551, %v1193
        %v1564 = vmul.f32 %v554, %v1203
        %v1565 = vmul.f32 %v556, %v1213
        %v1566 = vmul.f32 %v559, %v1223
        %v1567 = vmul.f32 %v561, %v1233
        %v1568 = vmul.f32 %v564, %v1243
        %v1569 = vmul.f32 %v566, %v1253
        %v1570 = vmul.f32 %v569, %v1263
        %v1571 = vmul.f32 %v571, %v1273
        %v1572 = vmul.f32 %v574, %v1283
        %v1573 = vmul.f32 %v576, %v1293
        %v1574 = vmul.f32 %v579, %v1303
        %v1575 = vmul.f32 %v581, %v1313
        %v1576 = vmul.f32 %v584, %v1323
        %v1577 = vmul.f32 %v586, %v1333
        %v1578 = vmul.f32 %v589, %v1343
        %v1579 = vmul.f32 %v591, %v1353
        %v1580 = vmul.f32 %v594, %v1363
        %v1581 = vmul.f32 %v596, %v1373
        %v1582 = vmul.f32 %v599, %v1383
        %v1583 = vmul.f32 %v601, %v1393
        %v1584 = vmul.f32 %v604, %v1403
        %v1585 = vmul.f32 %v606, %v1413
        %v1586 = vmul.f32 %v609, %v1423
        %v1587 = vmul.f32 %v611, %v1433
        %v1588 = vmul.f32 %v614, %v1443
        %v1589 = vmul.f32 %v616, %v1453
        %v1590 = vmul.f32 %v619, %v1463
        %v1591 = vmul.f32 %v621, %v1473
        %v1592 = vmul.f32 %v624, %v1483
        %v1593 = vmul.f32 %v626, %v1493
        %v1594 = vmul.f32 %v629, %v1503
        %v1595 = vmul.f32 %v631, %v1513
        %v1596 = vmul.f32 %v634, %v1523
        %v1597 = vmul.f32 %v636, %v1533
        %v1598 = vpack.c.bf16 %v1535, %v1534
        %v1599 = vpack.c.bf16 %v1537, %v1536
        %v1600 = vpack.c.bf16 %v1539, %v1538
        %v1601 = vpack.c.bf16 %v1541, %v1540
        %v1602 = vpack.c.bf16 %v1543, %v1542
        %v1603 = vpack.c.bf16 %v1545, %v1544
        %v1604 = vpack.c.bf16 %v1547, %v1546
        %v1605 = vpack.c.bf16 %v1549, %v1548
        %v1606 = vpack.c.bf16 %v1551, %v1550
        %v1607 = vpack.c.bf16 %v1553, %v1552
        %v1608 = vpack.c.bf16 %v1555, %v1554
        %v1609 = vpack.c.bf16 %v1557, %v1556
        %v1610 = vpack.c.bf16 %v1559, %v1558
        %v1611 = vpack.c.bf16 %v1561, %v1560
        %v1612 = vpack.c.bf16 %v1563, %v1562
        %v1613 = vpack.c.bf16 %v1565, %v1564
        %v1614 = vpack.c.bf16 %v1567, %v1566
        %v1615 = vpack.c.bf16 %v1569, %v1568
        %v1616 = vpack.c.bf16 %v1571, %v1570
        %v1617 = vpack.c.bf16 %v1573, %v1572
        %v1618 = vpack.c.bf16 %v1575, %v1574
        %v1619 = vpack.c.bf16 %v1577, %v1576
        %v1620 = vpack.c.bf16 %v1579, %v1578
        %v1621 = vpack.c.bf16 %v1581, %v1580
        %v1622 = vpack.c.bf16 %v1583, %v1582
        %v1623 = vpack.c.bf16 %v1585, %v1584
        %v1624 = vpack.c.bf16 %v1587, %v1586
        %v1625 = vpack.c.bf16 %v1589, %v1588
        %v1626 = vpack.c.bf16 %v1591, %v1590
        %v1627 = vpack.c.bf16 %v1593, %v1592
        %v1628 = vpack.c.bf16 %v1595, %v1594
        %v1629 = vpack.c.bf16 %v1597, %v1596
        %v1630 = vld [vmem:[%s3] sm:$0xf]
        %v1631 = vld [vmem:[%s3 + $0x4] sm:$0xf]
        %v1632 = vld [vmem:[%s3 + $0x8] sm:$0xf]
        %v1633 = vld [vmem:[%s3 + $0xc] sm:$0xf]
        %v1634 = vld [vmem:[%s3 + $0x10] sm:$0xf]
        %v1635 = vld [vmem:[%s3 + $0x14] sm:$0xf]
        %v1636 = vld [vmem:[%s3 + $0x18] sm:$0xf]
        %v1637 = vld [vmem:[%s3 + $0x1c] sm:$0xf]
        %v1638 = vld [vmem:[%s3 + $0x20] sm:$0xf]
        %v1639 = vld [vmem:[%s3 + $0x24] sm:$0xf]
        %v1640 = vld [vmem:[%s3 + $0x28] sm:$0xf]
        %v1641 = vld [vmem:[%s3 + $0x2c] sm:$0xf]
        %v1642 = vld [vmem:[%s3 + $0x30] sm:$0xf]
        %v1643 = vld [vmem:[%s3 + $0x34] sm:$0xf]
        %v1644 = vld [vmem:[%s3 + $0x38] sm:$0xf]
        %v1645 = vld [vmem:[%s3 + $0x3c] sm:$0xf]
        %v1662 = vunpack.c.l.b16 %v1630
        %v1663 = vunpack.c.l.b16 %v1631
        %v1664 = vunpack.c.l.b16 %v1632
        %v1665 = vunpack.c.l.b16 %v1633
        %v1666 = vunpack.c.l.b16 %v1634
        %v1667 = vunpack.c.l.b16 %v1635
        %v1668 = vunpack.c.l.b16 %v1636
        %v1669 = vunpack.c.l.b16 %v1637
        %v1670 = vunpack.c.l.b16 %v1638
        %v1671 = vunpack.c.l.b16 %v1639
        %v1672 = vunpack.c.l.b16 %v1640
        %v1673 = vunpack.c.l.b16 %v1641
        %v1674 = vunpack.c.l.b16 %v1642
        %v1675 = vunpack.c.l.b16 %v1643
        %v1676 = vunpack.c.l.b16 %v1644
        %v1677 = vunpack.c.l.b16 %v1645
        %v1678 = vpack.c.b16 %v1663, %v1662
        %v1679 = vpack.c.b16 %v1665, %v1664
        %v1680 = vpack.c.b16 %v1667, %v1666
        %v1681 = vpack.c.b16 %v1669, %v1668
        %v1682 = vpack.c.b16 %v1671, %v1670
        %v1683 = vpack.c.b16 %v1673, %v1672
        %v1684 = vpack.c.b16 %v1675, %v1674
        %v1685 = vpack.c.b16 %v1677, %v1676
        %1694 = vmatpush.bf16.msra.mxu0 %v1685
        %1695 = vmatpush.bf16.msra.mxu0 %v1684
        %1696 = vmatpush.bf16.msra.mxu0 %v1683
        %1697 = vmatpush.bf16.msra.mxu0 %v1682
        %1698 = vmatpush.bf16.msra.mxu0 %v1681
        %1699 = vmatpush.bf16.msra.mxu0 %v1680
        %1700 = vmatpush.bf16.msra.mxu0 %v1679
        %1701 = vmatpush.bf16.msra.mxu0 %v1678
        %1702 = vmatmul.bf16.gmra.mxu0 %v1598
        %v1703 = vpop.f32.mrf.mxu0
        %v1704 = vadd.f32 0.0, %v1703
        %v1705 = vpop.f32.mrf.mxu0
        %v1706 = vadd.f32 0.0, %v1705
        %1707 = vmatmul.bf16.gmra.mxu0 %v1599
        %v1708 = vpop.f32.mrf.mxu0
        %v1709 = vadd.f32 0.0, %v1708
        %v1710 = vpop.f32.mrf.mxu0
        %v1711 = vadd.f32 0.0, %v1710
        %1712 = vmatmul.bf16.gmra.mxu0 %v1600
        %v1713 = vpop.f32.mrf.mxu0
        %v1714 = vadd.f32 0.0, %v1713
        %v1715 = vpop.f32.mrf.mxu0
        %v1716 = vadd.f32 0.0, %v1715
        %1717 = vmatmul.bf16.gmra.mxu0 %v1601
        %v1718 = vpop.f32.mrf.mxu0
        %v1719 = vadd.f32 0.0, %v1718
        %v1720 = vpop.f32.mrf.mxu0
        %v1721 = vadd.f32 0.0, %v1720
        %1722 = vmatmul.bf16.gmra.mxu0 %v1602
        %v1723 = vpop.f32.mrf.mxu0
        %v1724 = vadd.f32 0.0, %v1723
        %v1725 = vpop.f32.mrf.mxu0
        %v1726 = vadd.f32 0.0, %v1725
        %1727 = vmatmul.bf16.gmra.mxu0 %v1603
        %v1728 = vpop.f32.mrf.mxu0
        %v1729 = vadd.f32 0.0, %v1728
        %v1730 = vpop.f32.mrf.mxu0
        %v1731 = vadd.f32 0.0, %v1730
        %1732 = vmatmul.bf16.gmra.mxu0 %v1604
        %v1733 = vpop.f32.mrf.mxu0
        %v1734 = vadd.f32 0.0, %v1733
        %v1735 = vpop.f32.mrf.mxu0
        %v1736 = vadd.f32 0.0, %v1735
        %1737 = vmatmul.bf16.gmra.mxu0 %v1605
        %v1738 = vpop.f32.mrf.mxu0
        %v1739 = vadd.f32 0.0, %v1738
        %v1740 = vpop.f32.mrf.mxu0
        %v1741 = vadd.f32 0.0, %v1740
        %1742 = vmatmul.bf16.gmra.mxu0 %v1606
        %v1743 = vpop.f32.mrf.mxu0
        %v1744 = vadd.f32 0.0, %v1743
        %v1745 = vpop.f32.mrf.mxu0
        %v1746 = vadd.f32 0.0, %v1745
        %1747 = vmatmul.bf16.gmra.mxu0 %v1607
        %v1748 = vpop.f32.mrf.mxu0
        %v1749 = vadd.f32 0.0, %v1748
        %v1750 = vpop.f32.mrf.mxu0
        %v1751 = vadd.f32 0.0, %v1750
        %1752 = vmatmul.bf16.gmra.mxu0 %v1608
        %v1753 = vpop.f32.mrf.mxu0
        %v1754 = vadd.f32 0.0, %v1753
        %v1755 = vpop.f32.mrf.mxu0
        %v1756 = vadd.f32 0.0, %v1755
        %1757 = vmatmul.bf16.gmra.mxu0 %v1609
        %v1758 = vpop.f32.mrf.mxu0
        %v1759 = vadd.f32 0.0, %v1758
        %v1760 = vpop.f32.mrf.mxu0
        %v1761 = vadd.f32 0.0, %v1760
        %1762 = vmatmul.bf16.gmra.mxu0 %v1610
        %v1763 = vpop.f32.mrf.mxu0
        %v1764 = vadd.f32 0.0, %v1763
        %v1765 = vpop.f32.mrf.mxu0
        %v1766 = vadd.f32 0.0, %v1765
        %1767 = vmatmul.bf16.gmra.mxu0 %v1611
        %v1768 = vpop.f32.mrf.mxu0
        %v1769 = vadd.f32 0.0, %v1768
        %v1770 = vpop.f32.mrf.mxu0
        %v1771 = vadd.f32 0.0, %v1770
        %1772 = vmatmul.bf16.gmra.mxu0 %v1612
        %v1773 = vpop.f32.mrf.mxu0
        %v1774 = vadd.f32 0.0, %v1773
        %v1775 = vpop.f32.mrf.mxu0
        %v1776 = vadd.f32 0.0, %v1775
        %1777 = vmatmul.bf16.gmra.mxu0 %v1613
        %v1778 = vpop.f32.mrf.mxu0
        %v1779 = vadd.f32 0.0, %v1778
        %v1780 = vpop.f32.mrf.mxu0
        %v1781 = vadd.f32 0.0, %v1780
        %1782 = vmatmul.bf16.gmra.mxu0 %v1614
        %v1783 = vpop.f32.mrf.mxu0
        %v1784 = vadd.f32 0.0, %v1783
        %v1785 = vpop.f32.mrf.mxu0
        %v1786 = vadd.f32 0.0, %v1785
        %1787 = vmatmul.bf16.gmra.mxu0 %v1615
        %v1788 = vpop.f32.mrf.mxu0
        %v1789 = vadd.f32 0.0, %v1788
        %v1790 = vpop.f32.mrf.mxu0
        %v1791 = vadd.f32 0.0, %v1790
        %1792 = vmatmul.bf16.gmra.mxu0 %v1616
        %v1793 = vpop.f32.mrf.mxu0
        %v1794 = vadd.f32 0.0, %v1793
        %v1795 = vpop.f32.mrf.mxu0
        %v1796 = vadd.f32 0.0, %v1795
        %1797 = vmatmul.bf16.gmra.mxu0 %v1617
        %v1798 = vpop.f32.mrf.mxu0
        %v1799 = vadd.f32 0.0, %v1798
        %v1800 = vpop.f32.mrf.mxu0
        %v1801 = vadd.f32 0.0, %v1800
        %1802 = vmatmul.bf16.gmra.mxu0 %v1618
        %v1803 = vpop.f32.mrf.mxu0
        %v1804 = vadd.f32 0.0, %v1803
        %v1805 = vpop.f32.mrf.mxu0
        %v1806 = vadd.f32 0.0, %v1805
        %1807 = vmatmul.bf16.gmra.mxu0 %v1619
        %v1808 = vpop.f32.mrf.mxu0
        %v1809 = vadd.f32 0.0, %v1808
        %v1810 = vpop.f32.mrf.mxu0
        %v1811 = vadd.f32 0.0, %v1810
        %1812 = vmatmul.bf16.gmra.mxu0 %v1620
        %v1813 = vpop.f32.mrf.mxu0
        %v1814 = vadd.f32 0.0, %v1813
        %v1815 = vpop.f32.mrf.mxu0
        %v1816 = vadd.f32 0.0, %v1815
        %1817 = vmatmul.bf16.gmra.mxu0 %v1621
        %v1818 = vpop.f32.mrf.mxu0
        %v1819 = vadd.f32 0.0, %v1818
        %v1820 = vpop.f32.mrf.mxu0
        %v1821 = vadd.f32 0.0, %v1820
        %1822 = vmatmul.bf16.gmra.mxu0 %v1622
        %v1823 = vpop.f32.mrf.mxu0
        %v1824 = vadd.f32 0.0, %v1823
        %v1825 = vpop.f32.mrf.mxu0
        %v1826 = vadd.f32 0.0, %v1825
        %1827 = vmatmul.bf16.gmra.mxu0 %v1623
        %v1828 = vpop.f32.mrf.mxu0
        %v1829 = vadd.f32 0.0, %v1828
        %v1830 = vpop.f32.mrf.mxu0
        %v1831 = vadd.f32 0.0, %v1830
        %1832 = vmatmul.bf16.gmra.mxu0 %v1624
        %v1833 = vpop.f32.mrf.mxu0
        %v1834 = vadd.f32 0.0, %v1833
        %v1835 = vpop.f32.mrf.mxu0
        %v1836 = vadd.f32 0.0, %v1835
        %1837 = vmatmul.bf16.gmra.mxu0 %v1625
        %v1838 = vpop.f32.mrf.mxu0
        %v1839 = vadd.f32 0.0, %v1838
        %v1840 = vpop.f32.mrf.mxu0
        %v1841 = vadd.f32 0.0, %v1840
        %1842 = vmatmul.bf16.gmra.mxu0 %v1626
        %v1843 = vpop.f32.mrf.mxu0
        %v1844 = vadd.f32 0.0, %v1843
        %v1845 = vpop.f32.mrf.mxu0
        %v1846 = vadd.f32 0.0, %v1845
        %1847 = vmatmul.bf16.gmra.mxu0 %v1627
        %v1848 = vpop.f32.mrf.mxu0
        %v1849 = vadd.f32 0.0, %v1848
        %v1850 = vpop.f32.mrf.mxu0
        %v1851 = vadd.f32 0.0, %v1850
        %1852 = vmatmul.bf16.gmra.mxu0 %v1628
        %v1853 = vpop.f32.mrf.mxu0
        %v1854 = vadd.f32 0.0, %v1853
        %v1855 = vpop.f32.mrf.mxu0
        %v1856 = vadd.f32 0.0, %v1855
        %1857 = vmatmul.bf16.gmra.mxu0 %v1629
        %v1858 = vpop.f32.mrf.mxu0
        %v1859 = vadd.f32 0.0, %v1858
        %v1860 = vpop.f32.mrf.mxu0
        %v1861 = vadd.f32 0.0, %v1860
        %1862 = vdwg.mxu0
        %v1863 = vpack.c.bf16 %v1704, %v1704
        %v1864 = vpack.c.bf16 %v1706, %v1706
        %v1865 = vpack.c.bf16 %v1709, %v1709
        %v1866 = vpack.c.bf16 %v1711, %v1711
        %v1867 = vpack.c.bf16 %v1714, %v1714
        %v1868 = vpack.c.bf16 %v1716, %v1716
        %v1869 = vpack.c.bf16 %v1719, %v1719
        %v1870 = vpack.c.bf16 %v1721, %v1721
        %v1871 = vpack.c.bf16 %v1724, %v1724
        %v1872 = vpack.c.bf16 %v1726, %v1726
        %v1873 = vpack.c.bf16 %v1729, %v1729
        %v1874 = vpack.c.bf16 %v1731, %v1731
        %v1875 = vpack.c.bf16 %v1734, %v1734
        %v1876 = vpack.c.bf16 %v1736, %v1736
        %v1877 = vpack.c.bf16 %v1739, %v1739
        %v1878 = vpack.c.bf16 %v1741, %v1741
        %v1879 = vpack.c.bf16 %v1744, %v1744
        %v1880 = vpack.c.bf16 %v1746, %v1746
        %v1881 = vpack.c.bf16 %v1749, %v1749
        %v1882 = vpack.c.bf16 %v1751, %v1751
        %v1883 = vpack.c.bf16 %v1754, %v1754
        %v1884 = vpack.c.bf16 %v1756, %v1756
        %v1885 = vpack.c.bf16 %v1759, %v1759
        %v1886 = vpack.c.bf16 %v1761, %v1761
        %v1887 = vpack.c.bf16 %v1764, %v1764
        %v1888 = vpack.c.bf16 %v1766, %v1766
        %v1889 = vpack.c.bf16 %v1769, %v1769
        %v1890 = vpack.c.bf16 %v1771, %v1771
        %v1891 = vpack.c.bf16 %v1774, %v1774
        %v1892 = vpack.c.bf16 %v1776, %v1776
        %v1893 = vpack.c.bf16 %v1779, %v1779
        %v1894 = vpack.c.bf16 %v1781, %v1781
        %v1895 = vpack.c.bf16 %v1784, %v1784
        %v1896 = vpack.c.bf16 %v1786, %v1786
        %v1897 = vpack.c.bf16 %v1789, %v1789
        %v1898 = vpack.c.bf16 %v1791, %v1791
        %v1899 = vpack.c.bf16 %v1794, %v1794
        %v1900 = vpack.c.bf16 %v1796, %v1796
        %v1901 = vpack.c.bf16 %v1799, %v1799
        %v1902 = vpack.c.bf16 %v1801, %v1801
        %v1903 = vpack.c.bf16 %v1804, %v1804
        %v1904 = vpack.c.bf16 %v1806, %v1806
        %v1905 = vpack.c.bf16 %v1809, %v1809
        %v1906 = vpack.c.bf16 %v1811, %v1811
        %v1907 = vpack.c.bf16 %v1814, %v1814
        %v1908 = vpack.c.bf16 %v1816, %v1816
        %v1909 = vpack.c.bf16 %v1819, %v1819
        %v1910 = vpack.c.bf16 %v1821, %v1821
        %v1911 = vpack.c.bf16 %v1824, %v1824
        %v1912 = vpack.c.bf16 %v1826, %v1826
        %v1913 = vpack.c.bf16 %v1829, %v1829
        %v1914 = vpack.c.bf16 %v1831, %v1831
        %v1915 = vpack.c.bf16 %v1834, %v1834
        %v1916 = vpack.c.bf16 %v1836, %v1836
        %v1917 = vpack.c.bf16 %v1839, %v1839
        %v1918 = vpack.c.bf16 %v1841, %v1841
        %v1919 = vpack.c.bf16 %v1844, %v1844
        %v1920 = vpack.c.bf16 %v1846, %v1846
        %v1921 = vpack.c.bf16 %v1849, %v1849
        %v1922 = vpack.c.bf16 %v1851, %v1851
        %v1923 = vpack.c.bf16 %v1854, %v1854
        %v1924 = vpack.c.bf16 %v1856, %v1856
        %v1925 = vpack.c.bf16 %v1859, %v1859
        %v1926 = vpack.c.bf16 %v1861, %v1861
        %1927 = vst [vmem:[%s203] sm:$0xf] %v1863
        %1928 = vst [vmem:[%s203 + $0x4] sm:$0xf] %v1864
        %1929 = vst [vmem:[%s203 + $0x8] sm:$0xf] %v1865
        %1930 = vst [vmem:[%s203 + $0xc] sm:$0xf] %v1866
        %1931 = vst [vmem:[%s203 + $0x10] sm:$0xf] %v1867
        %1932 = vst [vmem:[%s203 + $0x14] sm:$0xf] %v1868
        %1933 = vst [vmem:[%s203 + $0x18] sm:$0xf] %v1869
        %1934 = vst [vmem:[%s203 + $0x1c] sm:$0xf] %v1870
        %1935 = vst [vmem:[%s203 + $0x20] sm:$0xf] %v1871
        %1936 = vst [vmem:[%s203 + $0x24] sm:$0xf] %v1872
        %1937 = vst [vmem:[%s203 + $0x28] sm:$0xf] %v1873
        %1938 = vst [vmem:[%s203 + $0x2c] sm:$0xf] %v1874
        %1939 = vst [vmem:[%s203 + $0x30] sm:$0xf] %v1875
        %1940 = vst [vmem:[%s203 + $0x34] sm:$0xf] %v1876
        %1941 = vst [vmem:[%s203 + $0x38] sm:$0xf] %v1877
        %1942 = vst [vmem:[%s203 + $0x3c] sm:$0xf] %v1878
        %1943 = vst [vmem:[%s203 + $0x40] sm:$0xf] %v1879
        %1944 = vst [vmem:[%s203 + $0x44] sm:$0xf] %v1880
        %1945 = vst [vmem:[%s203 + $0x48] sm:$0xf] %v1881
        %1946 = vst [vmem:[%s203 + $0x4c] sm:$0xf] %v1882
        %1947 = vst [vmem:[%s203 + $0x50] sm:$0xf] %v1883
        %1948 = vst [vmem:[%s203 + $0x54] sm:$0xf] %v1884
        %1949 = vst [vmem:[%s203 + $0x58] sm:$0xf] %v1885
        %1950 = vst [vmem:[%s203 + $0x5c] sm:$0xf] %v1886
        %1951 = vst [vmem:[%s203 + $0x60] sm:$0xf] %v1887
        %1952 = vst [vmem:[%s203 + $0x64] sm:$0xf] %v1888
        %1953 = vst [vmem:[%s203 + $0x68] sm:$0xf] %v1889
        %1954 = vst [vmem:[%s203 + $0x6c] sm:$0xf] %v1890
        %1955 = vst [vmem:[%s203 + $0x70] sm:$0xf] %v1891
        %1956 = vst [vmem:[%s203 + $0x74] sm:$0xf] %v1892
        %1957 = vst [vmem:[%s203 + $0x78] sm:$0xf] %v1893
        %1958 = vst [vmem:[%s203 + $0x7c] sm:$0xf] %v1894
        %1959 = vst [vmem:[%s203 + $0x80] sm:$0xf] %v1895
        %1960 = vst [vmem:[%s203 + $0x84] sm:$0xf] %v1896
        %1961 = vst [vmem:[%s203 + $0x88] sm:$0xf] %v1897
        %1962 = vst [vmem:[%s203 + $0x8c] sm:$0xf] %v1898
        %1963 = vst [vmem:[%s203 + $0x90] sm:$0xf] %v1899
        %1964 = vst [vmem:[%s203 + $0x94] sm:$0xf] %v1900
        %1965 = vst [vmem:[%s203 + $0x98] sm:$0xf] %v1901
        %1966 = vst [vmem:[%s203 + $0x9c] sm:$0xf] %v1902
        %1967 = vst [vmem:[%s203 + $0xa0] sm:$0xf] %v1903
        %1968 = vst [vmem:[%s203 + $0xa4] sm:$0xf] %v1904
        %1969 = vst [vmem:[%s203 + $0xa8] sm:$0xf] %v1905
        %1970 = vst [vmem:[%s203 + $0xac] sm:$0xf] %v1906
        %1971 = vst [vmem:[%s203 + $0xb0] sm:$0xf] %v1907
        %1972 = vst [vmem:[%s203 + $0xb4] sm:$0xf] %v1908
        %1973 = vst [vmem:[%s203 + $0xb8] sm:$0xf] %v1909
        %1974 = vst [vmem:[%s203 + $0xbc] sm:$0xf] %v1910
        %1975 = vst [vmem:[%s203 + $0xc0] sm:$0xf] %v1911
        %1976 = vst [vmem:[%s203 + $0xc4] sm:$0xf] %v1912
        %1977 = vst [vmem:[%s203 + $0xc8] sm:$0xf] %v1913
        %1978 = vst [vmem:[%s203 + $0xcc] sm:$0xf] %v1914
        %1979 = vst [vmem:[%s203 + $0xd0] sm:$0xf] %v1915
        %1980 = vst [vmem:[%s203 + $0xd4] sm:$0xf] %v1916
        %1981 = vst [vmem:[%s203 + $0xd8] sm:$0xf] %v1917
        %1982 = vst [vmem:[%s203 + $0xdc] sm:$0xf] %v1918
        %1983 = vst [vmem:[%s203 + $0xe0] sm:$0xf] %v1919
        %1984 = vst [vmem:[%s203 + $0xe4] sm:$0xf] %v1920
        %1985 = vst [vmem:[%s203 + $0xe8] sm:$0xf] %v1921
        %1986 = vst [vmem:[%s203 + $0xec] sm:$0xf] %v1922
        %1987 = vst [vmem:[%s203 + $0xf0] sm:$0xf] %v1923
        %1988 = vst [vmem:[%s203 + $0xf4] sm:$0xf] %v1924
        %1989 = vst [vmem:[%s203 + $0xf8] sm:$0xf] %v1925
        %1990 = vst [vmem:[%s203 + $0xfc] sm:$0xf] %v1926
        %s1991 = sand.u32 %s115, 1
        %s1992 = scalar_lea.sflag [#allocation3], %s1991
        %s1993 = sand.u32 %s115, 1
        %s1994 = smul.addr %s1993, 256
        %s1995 = scalar_lea.vmem [#allocation2], %s1994
        // Predicated region
        $region37: #{tpu_custom_call.1} parent=35 // pred_check
          %p1996 = pneg %p125
        $region38: #{tpu_custom_call.1} parent=35 // pred_check_branch
          %1998 = sbr.rel (%p1996) target = $region40
        $region39: #{tpu_custom_call.1} parent=35 // pred_region
          %s1999 = smul.u32 64, %s18
          %s2000 = ssub.s32 250, %s1999
          %p2001 = scmp.lt.s32.totalorder %s2000, 64
          %s2002 = scalar_select %p2001, %s2000, 64
          %s2003 = smul.u32 4, %s2002
          %s2004 = ssub.s32 256, %s2003
          %s2005 = sshll.u32 %s2004, 4
          %2006 = vsyncadd %s1992, %s2005
          %p2007 = scmp.ne.s32.totalorder 0, %s2003
          %s2008 = smul.addr %s1999, 4
          %s2009 = scalar_lea.hbm %s4, %s2008
          %s2010 = smul.u32 4, %s2002
          %s2011 = sshll.u32 %s1995, 4
          %s2012 = int_to_ptr.vmem [resolvable:$true] %s2011
          %s2013 = sshll.u32 %s2009, 4
          %s2014 = int_to_ptr.hbm [resolvable:$true] %s2013
          %s2015 = sshll.u32 %s2010, 4
          %2019 = dma.vmem_to_hbm [thread:$0]  (%p2007), %s2012, %s2015, %s2014, %s1992, 64, 64, 4
        $region40: #{tpu_custom_call.1} parent=35 // pred_fallthru
          _
      $region36: #{tpu_custom_call.1} parent=5 // pred_fallthru
        _
      %p2020 = scmp.le.s32.totalorder 2, %s13
      // Predicated region
      $region41: #{tpu_custom_call.1} parent=5 // pred_check
        %p2021 = pneg %p2020
      $region42: #{tpu_custom_call.1} parent=5 // pred_check_branch
        %2023 = sbr.rel (%p2021) target = $region44
      $region43: #{tpu_custom_call.1} parent=5 // pred_region
        %s2024 = ssub.s32 %s13, 2
        // Predicated region
        $region45: #{tpu_custom_call.1} parent=43 // pred_check
          %p2025 = pneg %p131
        $region46: #{tpu_custom_call.1} parent=43 // pred_check_branch
          %2027 = sbr.rel (%p2025) target = $region48
        $region47: #{tpu_custom_call.1} parent=43 // pred_region
          %s2028 = sand.u32 %s116, 1
          %s2029 = scalar_lea.sflag [#allocation3], %s2028
          %s2030 = sand.u32 %s116, 1
          %s2031 = smul.addr %s2030, 256
          %s2032 = scalar_lea.vmem [#allocation2], %s2031
          %2034 = dma.done %s2029, 4096
        $region48: #{tpu_custom_call.1} parent=43 // pred_fallthru
          _
      $region44: #{tpu_custom_call.1} parent=5 // pred_fallthru
        _
    $region6: #{tpu_custom_call.1} parent=1 // loop_footer
      %s17 = sadd.s32 1, %s13
    $region7: #{tpu_custom_call.1} parent=1 // loop_footer_branch
      %12 = sbr.rel target = $region3
    $region8: #{tpu_custom_call.1} parent=1 // loop_exit
      _
    %2035 = vsyncpa [#allocation3], 1
    %s2036 = scalar_lea.sflag [#allocation3], 1
    %2037 = vsyncpa %s2036, 1

</llo_original>
